<compile_context>
chip_gen: v6e
topology: v6e:2x2x1
jax: 0.10.0
libtpu: 0.0.40
codegen_flags: <defaults>
</compile_context>

<pallas_src>
import jax
import jax.numpy as jnp
from jax.experimental import pallas as pl
from jax.experimental.pallas import tpu as pltpu

VMEM = pl.BlockSpec(memory_space=pltpu.MemorySpace.VMEM)
VMEM_LIMIT = 32 * 1024 * 1024   # explicit scoped-VMEM budget, safe on v5e/v6e/v7x
NUM_CLASSES = 10
FC_PAD = 128                    # lane-dense FC output width
TM_MAX = 512                    # largest single-tile M (fast path) / M tile (general)
EPS = 1e-5                      # nn.BatchNorm2d default


def cparams(*dims):
    return pltpu.CompilerParams(
        dimension_semantics=dims if dims else None,
        vmem_limit_bytes=VMEM_LIMIT,
    )


def round_up(x, m):
    return (x + m - 1) // m * m


def choose_tk(k_pad):
    # k_pad is a multiple of 128; pick the largest MXU-friendly tile dividing it.
    for tk in (512, 384, 256, 128):
        if k_pad % tk == 0:
            return tk
    return 128


# --------------------------------------------------------------------------
# Pallas kernels
# --------------------------------------------------------------------------
def make_fused_conv_kernel(m_real, relu, has_residual):
    """Fast path: GEMM + train-mode BN (+ residual add) (+ ReLU), one M tile.

    grid = (Cout_tiles, K_tiles); K (axis 1) is the reduction axis.  BatchNorm
    statistics are per-channel, so tiling Cout across grid axis 0 is exact
    (and gives v7x's second TensorCore work).
    """
    inv_m = 1.0 / float(m_real)

    def kernel(a_ref, w_ref, g_ref, b_ref, *rest):
        if has_residual:
            r_ref, o_ref, acc_ref = rest
        else:
            o_ref, acc_ref = rest
        kk = pl.program_id(1)

        @pl.when(kk == 0)
        def _():
            acc_ref[...] = jnp.zeros_like(acc_ref)

        acc_ref[...] += jnp.dot(a_ref[...], w_ref[...],
                                preferred_element_type=jnp.float32)

        @pl.when(kk == pl.num_programs(1) - 1)
        def _():
            y = acc_ref[...]                                   # f32 (M_pad, tn)
            # Padded rows of A are zero, so they contribute 0 to both sums;
            # the divide uses the real row count.
            mean = jnp.sum(y, axis=0, keepdims=True) * inv_m
            var = jnp.maximum(
                jnp.sum(y * y, axis=0, keepdims=True) * inv_m - mean * mean, 0.0)
            scale = g_ref[...] * jax.lax.rsqrt(var + EPS)
            shift = b_ref[...] - mean * scale
            out = y * scale + shift
            if has_residual:
                out = out + r_ref[...].astype(jnp.float32)
            if relu:
                out = jnp.maximum(out, 0.0)
            o_ref[...] = out.astype(o_ref.dtype)

    return kernel


def conv_gemm_general_kernel(a_ref, w_ref, o_ref, stats_ref, acc_ref):
    """General path: grid = (Mt, Kt).  The full weight stays resident in VMEM
    (constant index_map) and is sliced in-kernel, so it is DMA'd only once
    instead of once per M tile.  Emits bf16 output + per-tile BN partial stats.
    """
    kk = pl.program_id(1)
    tk = a_ref.shape[1]

    @pl.when(kk == 0)
    def _():
        acc_ref[...] = jnp.zeros_like(acc_ref)

    k0 = pl.multiple_of(kk * tk, tk)
    acc_ref[...] += jnp.dot(a_ref[...], w_ref[pl.ds(k0, tk), :],
                            preferred_element_type=jnp.float32)

    @pl.when(kk == pl.num_programs(1) - 1)
    def _():
        y = acc_ref[...]
        o_ref[...] = y.astype(o_ref.dtype)
        s = jnp.sum(y, axis=0, keepdims=True)
        ss = jnp.sum(y * y, axis=0, keepdims=True)
        pad = jnp.zeros((6, y.shape[1]), jnp.float32)
        stats_ref[...] = jnp.concatenate([s, ss, pad], axis=0)


def make_bn_apply_kernel(relu, has_residual):
    # General path tail: out = relu?(y * scale + shift [+ residual]), bf16 out.
    def kernel(y_ref, s_ref, b_ref, *rest):
        if has_residual:
            r_ref, o_ref = rest
        else:
            (o_ref,) = rest
        out = y_ref[...].astype(jnp.float32) * s_ref[...] + b_ref[...]
        if has_residual:
            out = out + r_ref[...].astype(jnp.float32)
        if relu:
            out = jnp.maximum(out, 0.0)
        o_ref[...] = out.astype(o_ref.dtype)
    return kernel


def maxpool_kernel(x_ref, o_ref):
    # x: (9, tm, Cv) shifted window slabs -> elementwise chained maximum (VPU).
    acc = x_ref[0]
    for t in range(1, 9):
        acc = jnp.maximum(acc, x_ref[t])
    o_ref[...] = acc


def head_kernel(x_ref, w_ref, b_ref, o_ref):
    # Fused AdaptiveAvgPool2d(1) + Linear + log_softmax (bf16 MXU, f32 acc).
    pooled = jnp.mean(x_ref[...].astype(jnp.float32), axis=1)          # (N, C)
    logits = jnp.dot(pooled.astype(jnp.bfloat16), w_ref[...],
                     preferred_element_type=jnp.float32) + b_ref[...]
    m = jnp.max(logits, axis=-1, keepdims=True)
    lse = m + jnp.log(jnp.sum(jnp.exp(logits - m), axis=-1, keepdims=True))
    o_ref[...] = logits - lse


# --------------------------------------------------------------------------
# Glue: im2col patch extraction (plain JAX, built directly in bf16)
# --------------------------------------------------------------------------
def im2col(x_nhwc, k, s, p):
    N, H, W, C = x_nhwc.shape
    xp = jnp.pad(x_nhwc, ((0, 0), (p, p), (p, p), (0, 0)))
    OH = (H + 2 * p - k) // s + 1
    OW = (W + 2 * p - k) // s + 1
    cols = []
    for di in range(k):
        for dj in range(k):
            cols.append(xp[:, di:di + OH * s:s, dj:dj + OW * s:s, :])
    patches = jnp.stack(cols, axis=3)  # (N, OH, OW, k*k, C), dtype of x (bf16)
    return patches, OH, OW


# --------------------------------------------------------------------------
# Conv + BN (+ residual) (+ ReLU) wrappers
# --------------------------------------------------------------------------
def conv_fused_call(A, Wm, g, b, m_real, Cout, tk, relu, r_pad):
    M_pad, K_pad = A.shape
    Kt = K_pad // tk
    tn = 256 if Cout % 256 == 0 else Cout
    Nt = Cout // tn
    kernel = make_fused_conv_kernel(m_real, relu, r_pad is not None)
    in_specs = [pl.BlockSpec((M_pad, tk), lambda j, kk: (0, kk)),
                pl.BlockSpec((tk, tn), lambda j, kk: (kk, j)),
                pl.BlockSpec((1, tn), lambda j, kk: (0, j)),
                pl.BlockSpec((1, tn), lambda j, kk: (0, j))]
    args = [A, Wm, g, b]
    if r_pad is not None:
        in_specs.append(pl.BlockSpec((M_pad, tn), lambda j, kk: (0, j)))
        args.append(r_pad)
    return pl.pallas_call(
        kernel,
        out_shape=jax.ShapeDtypeStruct((M_pad, Cout), jnp.bfloat16),
        grid=(Nt, Kt),
        in_specs=in_specs,
        out_specs=pl.BlockSpec((M_pad, tn), lambda j, kk: (0, j)),
        scratch_shapes=[pltpu.VMEM((M_pad, tn), jnp.float32)],
        compiler_params=cparams("parallel", "arbitrary"),
    )(*args)


def conv_gemm_general(A, Wm, Cout, tm, tk):
    M_pad, K_pad = A.shape
    Mt, Kt = M_pad // tm, K_pad // tk
    y, stats = pl.pallas_call(
        conv_gemm_general_kernel,
        out_shape=(jax.ShapeDtypeStruct((M_pad, Cout), jnp.bfloat16),
                   jax.ShapeDtypeStruct((Mt * 8, Cout), jnp.float32)),
        grid=(Mt, Kt),
        in_specs=[pl.BlockSpec((tm, tk), lambda i, kk: (i, kk)),
                  pl.BlockSpec((K_pad, Cout), lambda i, kk: (0, 0))],  # resident W
        out_specs=(pl.BlockSpec((tm, Cout), lambda i, kk: (i, 0)),
                   pl.BlockSpec((8, Cout), lambda i, kk: (i, 0))),
        scratch_shapes=[pltpu.VMEM((tm, Cout), jnp.float32)],
        compiler_params=cparams("parallel", "arbitrary"),
    )(A, Wm)
    return y, stats.reshape(Mt, 8, Cout)


def bn_scale_shift(stats, gamma, beta, m_real):
    # Reduce per-tile partial sums (tiny, plain JAX) into BN scale/shift.
    s = jnp.sum(stats[:, 0, :], axis=0)
    ss = jnp.sum(stats[:, 1, :], axis=0)
    mean = s / m_real
    var = jnp.maximum(ss / m_real - mean * mean, 0.0)
    scale = gamma * jax.lax.rsqrt(var + EPS)
    shift = beta - mean * scale
    cout = scale.shape[0]
    return (scale.reshape(1, cout).astype(jnp.float32),
            shift.reshape(1, cout).astype(jnp.float32))


def bn_apply(y_pad, scale, shift, r_pad, relu, tm, M_pad, Cout):
    Mt = M_pad // tm
    kernel = make_bn_apply_kernel(relu, r_pad is not None)
    in_specs = [pl.BlockSpec((tm, Cout), lambda i: (i, 0)),
                pl.BlockSpec((1, Cout), lambda i: (0, 0)),
                pl.BlockSpec((1, Cout), lambda i: (0, 0))]
    args = [y_pad, scale, shift]
    if r_pad is not None:
        in_specs.append(pl.BlockSpec((tm, Cout), lambda i: (i, 0)))
        args.append(r_pad)
    return pl.pallas_call(
        kernel,
        out_shape=jax.ShapeDtypeStruct((M_pad, Cout), jnp.bfloat16),
        grid=(Mt,),
        in_specs=in_specs,
        out_specs=pl.BlockSpec((tm, Cout), lambda i: (i, 0)),
        compiler_params=cparams("parallel"),
    )(*args)


def conv_bn(x, w, gamma, beta, *, k, s, p, relu=True, residual=None):
    """x: NHWC bf16 -> relu?(BN(conv(x)) [+ residual]) as NHWC bf16.

    Train-mode BatchNorm batch statistics.  Conv bias (PrepBlock) is dropped:
    a per-channel constant before train-mode BN is cancelled exactly by the
    mean subtraction.
    """
    N = x.shape[0]
    Cout = w.shape[0]
    patches, OH, OW = im2col(x, k, s, p)
    M = N * OH * OW
    K = k * k * x.shape[3]
    A = patches.reshape(M, K)                                        # bf16
    Wm = jnp.transpose(w, (2, 3, 1, 0)).reshape(K, Cout).astype(jnp.bfloat16)

    K_pad = round_up(K, 128)
    tk = choose_tk(K_pad)
    Wm = jnp.pad(Wm, ((0, K_pad - K), (0, 0)))
    g = gamma.reshape(1, Cout).astype(jnp.float32)
    b = beta.reshape(1, Cout).astype(jnp.float32)
    res_flat = None if residual is None else residual.reshape(M, Cout)

    if round_up(M, 16) <= TM_MAX:
        # Fast path (single M tile): BN stats + affine (+ residual, ReLU) fused
        # into the GEMM epilogue.
        M_pad = round_up(M, 16)
        A = jnp.pad(A, ((0, M_pad - M), (0, K_pad - K)))
        r_pad = None if res_flat is None else jnp.pad(
            res_flat, ((0, M_pad - M), (0, 0)))
        out = conv_fused_call(A, Wm, g, b, M, Cout, tk, relu, r_pad)
    else:
        # General path (large M): gridded GEMM + partial stats, tiny host-side
        # reduce, then one fused affine/residual/ReLU kernel.
        tm = TM_MAX
        M_pad = round_up(M, tm)
        A = jnp.pad(A, ((0, M_pad - M), (0, K_pad - K)))
        y, stats = conv_gemm_general(A, Wm, Cout, tm, tk)
        sc, sh = bn_scale_shift(stats, gamma, beta, M)
        r_pad = None if res_flat is None else jnp.pad(
            res_flat, ((0, M_pad - M), (0, 0)))
        out = bn_apply(y, sc, sh, r_pad, relu, tm, M_pad, Cout)

    return out[:M].reshape(N, OH, OW, Cout)


def maxpool_3x3_s2_p1(x):
    N, H, W, C = x.shape
    xp = jnp.pad(x, ((0, 0), (1, 1), (1, 1), (0, 0)),
                 constant_values=float("-inf"))
    OH = (H + 2 - 3) // 2 + 1
    OW = (W + 2 - 3) // 2 + 1
    M = N * OH * OW
    slabs = [xp[:, di:di + OH * 2:2, dj:dj + OW * 2:2, :].reshape(M, C)
             for di in range(3) for dj in range(3)]
    A = jnp.stack(slabs, axis=0)                                 # (9, M, C) bf16

    # Lane-dense view: fold rows so the last dim is a full 128 lanes (C=64
    # would otherwise lower to masked vst.msk partial stores).  The max is
    # elementwise so the reinterpretation is exact.
    fold = 128 // C if (C < 128 and 128 % C == 0 and M % (128 // C) == 0) else 1
    Mv, Cv = M // fold, C * fold
    A = A.reshape(9, Mv, Cv)

    tm = min(TM_MAX, round_up(Mv, 8))
    M_pad = round_up(Mv, tm)
    A = jnp.pad(A, ((0, 0), (0, M_pad - Mv), (0, 0)),
                constant_values=float("-inf"))
    Mt = M_pad // tm
    out = pl.pallas_call(
        maxpool_kernel,
        out_shape=jax.ShapeDtypeStruct((M_pad, Cv), x.dtype),
        grid=(Mt,),
        in_specs=[pl.BlockSpec((9, tm, Cv), lambda i: (0, i, 0))],
        out_specs=pl.BlockSpec((tm, Cv), lambda i: (i, 0)),
        compiler_params=cparams("parallel"),
    )(A)
    return out[:Mv].reshape(N, OH, OW, C)


def head(x, fc_w, fc_b):
    N, H, W, C = x.shape
    xr = x.reshape(N, H * W, C)                                  # bf16
    w_pad = jnp.pad(fc_w, ((0, 0), (0, FC_PAD - NUM_CLASSES))).astype(jnp.bfloat16)
    b_pad = jnp.concatenate(
        [fc_b.astype(jnp.float32),
         jnp.full((FC_PAD - NUM_CLASSES,), -1e30, jnp.float32)]).reshape(1, FC_PAD)
    out = pl.pallas_call(
        head_kernel,
        out_shape=jax.ShapeDtypeStruct((N, FC_PAD), jnp.float32),
        in_specs=[VMEM, VMEM, VMEM],
        out_specs=VMEM,
        compiler_params=cparams(),
    )(xr, w_pad, b_pad)
    return out[:, :NUM_CLASSES]


# --------------------------------------------------------------------------
# Network structure
# --------------------------------------------------------------------------
def basic_block(x, blk):
    stride = blk["stride"]
    # conv1 + BN1 + ReLU (BN fused into GEMM epilogue on the fast path)
    h = conv_bn(x, blk["w1"], blk["g1"], blk["b1"], k=3, s=stride, p=1, relu=True)
    # shortcut: projection (1x1 conv + BN, no ReLU) or identity
    if "ws" in blk:
        r = conv_bn(x, blk["ws"], blk["gs"], blk["bs"], k=1, s=stride, p=0,
                    relu=False)
    else:
        r = x
    # conv2 + BN2 + residual add + ReLU (all fused on the fast path)
    return conv_bn(h, blk["w2"], blk["g2"], blk["b2"], k=3, s=1, p=1,
                   relu=True, residual=r)


def layer_forward(params, x_nchw):
    # NCHW -> NHWC, bf16 end-to-end (f32 accumulation / BN math inside kernels).
    x = jnp.transpose(x_nchw, (0, 2, 3, 1)).astype(jnp.bfloat16)

    # layer1: PrepBlock (conv bias dropped — cancelled by train-mode BN).
    pr = params["prep"]
    x = conv_bn(x, pr["w"], pr["gamma"], pr["beta"], k=7, s=2, p=3, relu=True)
    x = maxpool_3x3_s2_p1(x)

    # layer2..layer5: 2 BasicBlocks each
    for blk in params["blocks"]:
        x = basic_block(x, blk)

    # AdaptiveAvgPool2d(1) + fc + log_softmax (fused)
    return head(x, params["fc_w"], params["fc_b"])


# --------------------------------------------------------------------------
# Deterministic parameter initialization (shapes follow the PyTorch module)
# --------------------------------------------------------------------------
def _init_conv(key, cout, cin, k):
    fan_in = cin * k * k
    return jax.random.normal(key, (cout, cin, k, k), jnp.float32) * (fan_in ** -0.5)


def init_params(key):
    keys = iter(jax.random.split(key, 32))
    p = {}
    p["prep"] = {
        "w": _init_conv(next(keys), 64, 3, 7),
        "gamma": jnp.ones((64,), jnp.float32),
        "beta": jnp.zeros((64,), jnp.float32),
    }

    def make_block(cin, cout, stride):
        d = {
            "w1": _init_conv(next(keys), cout, cin, 3),
            "g1": jnp.ones((cout,), jnp.float32),
            "b1": jnp.zeros((cout,), jnp.float32),
            "w2": _init_conv(next(keys), cout, cout, 3),
            "g2": jnp.ones((cout,), jnp.float32),
            "b2": jnp.zeros((cout,), jnp.float32),
            "stride": stride,
        }
        if stride != 1 or cin != cout:
            d["ws"] = _init_conv(next(keys), cout, cin, 1)
            d["gs"] = jnp.ones((cout,), jnp.float32)
            d["bs"] = jnp.zeros((cout,), jnp.float32)
        return d

    p["blocks"] = [
        make_block(64, 64, 1), make_block(64, 64, 1),      # layer2
        make_block(64, 128, 2), make_block(128, 128, 1),   # layer3
        make_block(128, 256, 2), make_block(256, 256, 1),  # layer4
        make_block(256, 512, 2), make_block(512, 512, 1),  # layer5
    ]
    # nn.Linear(512, 10): stored directly as (in, out)
    p["fc_w"] = jax.random.normal(next(keys), (512, 10), jnp.float32) * (512 ** -0.5)
    p["fc_b"] = jnp.zeros((10,), jnp.float32)
    return p


# --------------------------------------------------------------------------
if __name__ == "__main__":
    key = jax.random.PRNGKey(0)
    pkey, xkey = jax.random.split(key)
    params = init_params(pkey)
    # Small NCHW input (3-channel, 32x32 -> 1x1 after the 5 downsampling stages)
    x = jax.random.normal(xkey, (2, 3, 32, 32), jnp.float32)

    out = layer_forward(params, x)
    out = jax.block_until_ready(out)
    assert out.shape == (2, 10)
    assert bool(jnp.all(jnp.isfinite(out)))
    print("KERNEL_OK")
</pallas_src>

<mosaic_0001>
module attributes {stable_mosaic.version = 11 : i64} {
  func.func @kernel(%arg0: i32, %arg1: i32, %arg2: memref<512x256xbf16, #tpu.memory_space<vmem>>, %arg3: memref<256x64xbf16, #tpu.memory_space<vmem>>, %arg4: memref<1x64xf32, #tpu.memory_space<vmem>>, %arg5: memref<1x64xf32, #tpu.memory_space<vmem>>, %arg6: memref<512x64xbf16, #tpu.memory_space<vmem>>, %arg7: memref<512x64xf32, #tpu.memory_space<vmem>>) attributes {dimension_semantics = [#tpu.dimension_semantics<parallel>, #tpu.dimension_semantics<arbitrary>], iteration_bounds = array<i64: 1, 1>, scalar_prefetch = 0 : i64, scratch_operands = 1 : i64, tpu.core_type = #tpu.core_type<tc>, window_params = [{transform_indices = @transform_0, window_bounds = array<i64: 512, 256>}, {transform_indices = @transform_1, window_bounds = array<i64: 256, 64>}, {transform_indices = @transform_2, window_bounds = array<i64: 1, 64>}, {transform_indices = @transform_3, window_bounds = array<i64: 1, 64>}, {transform_indices = @transform_4, window_bounds = array<i64: 512, 64>}]} {
    %c0_i32 = arith.constant 0 : i32
    %0 = arith.cmpi eq, %arg1, %c0_i32 : i32
    %1 = arith.extui %0 : i1 to i32
    %c0_i32_0 = arith.constant 0 : i32
    %2 = arith.cmpi ne, %1, %c0_i32_0 : i32
    scf.if %2 {
      %cst_10 = arith.constant 0.000000e+00 : f32
      %12 = vector.broadcast %cst_10 : f32 to vector<512x64xf32>
      %c0_11 = arith.constant 0 : index
      %c0_12 = arith.constant 0 : index
      %13 = vector.load %arg7[%c0_11, %c0_12] : memref<512x64xf32, #tpu.memory_space<vmem>>, vector<512x64xf32>
      tpu.vector_store %arg7[%c0_11, %c0_12], %12 {strides = array<i32>} : memref<512x64xf32, #tpu.memory_space<vmem>>, vector<512x64xf32>,
    } else {
    }
    %c0 = arith.constant 0 : index
    %c0_1 = arith.constant 0 : index
    %3 = vector.load %arg7[%c0, %c0_1] : memref<512x64xf32, #tpu.memory_space<vmem>>, vector<512x64xf32>
    %c0_2 = arith.constant 0 : index
    %c0_3 = arith.constant 0 : index
    %4 = vector.load %arg2[%c0_2, %c0_3] : memref<512x256xbf16, #tpu.memory_space<vmem>>, vector<512x256xbf16>
    %c0_4 = arith.constant 0 : index
    %c0_5 = arith.constant 0 : index
    %5 = vector.load %arg3[%c0_4, %c0_5] : memref<256x64xbf16, #tpu.memory_space<vmem>>, vector<256x64xbf16>
    %cst = arith.constant dense<0.000000e+00> : vector<512x64xf32>
    %6 = tpu.matmul %4, %5, %cst {dimension_numbers = #tpu.dot_dimension_numbers<[1], [0], [0], [1], [0, 0, 1, 1], [], []>} : vector<512x256xbf16>, vector<256x64xbf16>, vector<512x64xf32> -> vector<512x64xf32>
    %7 = arith.addf %3, %6 : vector<512x64xf32>
    %c0_6 = arith.constant 0 : index
    %c0_7 = arith.constant 0 : index
    %8 = vector.load %arg7[%c0_6, %c0_7] : memref<512x64xf32, #tpu.memory_space<vmem>>, vector<512x64xf32>
    tpu.vector_store %arg7[%c0_6, %c0_7], %7 {strides = array<i32>} : memref<512x64xf32, #tpu.memory_space<vmem>>, vector<512x64xf32>,
    %c0_i32_8 = arith.constant 0 : i32
    %9 = arith.cmpi eq, %arg1, %c0_i32_8 : i32
    %10 = arith.extui %9 : i1 to i32
    %c0_i32_9 = arith.constant 0 : i32
    %11 = arith.cmpi ne, %10, %c0_i32_9 : i32
    scf.if %11 {
      %c0_10 = arith.constant 0 : index
      %c0_11 = arith.constant 0 : index
      %12 = vector.load %arg7[%c0_10, %c0_11] : memref<512x64xf32, #tpu.memory_space<vmem>>, vector<512x64xf32>
      %cst_12 = arith.constant dense<0.000000e+00> : vector<64xf32>
      %13 = vector.multi_reduction <add>, %12, %cst_12 [0] : vector<512x64xf32> to vector<64xf32>
      %14 = vector.shape_cast %13 : vector<64xf32> to vector<1x64xf32>
      %cst_13 = arith.constant 0.001953125 : f32
      %15 = vector.broadcast %cst_13 : f32 to vector<1x64xf32>
      %16 = arith.mulf %14, %15 : vector<1x64xf32>
      %17 = arith.mulf %12, %12 : vector<512x64xf32>
      %cst_14 = arith.constant dense<0.000000e+00> : vector<64xf32>
      %18 = vector.multi_reduction <add>, %17, %cst_14 [0] : vector<512x64xf32> to vector<64xf32>
      %19 = vector.shape_cast %18 : vector<64xf32> to vector<1x64xf32>
      %cst_15 = arith.constant 0.001953125 : f32
      %20 = vector.broadcast %cst_15 : f32 to vector<1x64xf32>
      %21 = arith.mulf %19, %20 : vector<1x64xf32>
      %22 = arith.mulf %16, %16 : vector<1x64xf32>
      %23 = arith.subf %21, %22 : vector<1x64xf32>
      %cst_16 = arith.constant 0.000000e+00 : f32
      %24 = vector.broadcast %cst_16 : f32 to vector<1x64xf32>
      %25 = arith.maximumf %23, %24 : vector<1x64xf32>
      %c0_17 = arith.constant 0 : index
      %c0_18 = arith.constant 0 : index
      %26 = vector.load %arg4[%c0_17, %c0_18] : memref<1x64xf32, #tpu.memory_space<vmem>>, vector<1x64xf32>
      %cst_19 = arith.constant 9.99999974E-6 : f32
      %27 = vector.broadcast %cst_19 : f32 to vector<1x64xf32>
      %28 = arith.addf %25, %27 : vector<1x64xf32>
      %29 = math.rsqrt %28 : vector<1x64xf32>
      %30 = arith.mulf %26, %29 : vector<1x64xf32>
      %c0_20 = arith.constant 0 : index
      %c0_21 = arith.constant 0 : index
      %31 = vector.load %arg5[%c0_20, %c0_21] : memref<1x64xf32, #tpu.memory_space<vmem>>, vector<1x64xf32>
      %32 = arith.mulf %16, %30 : vector<1x64xf32>
      %33 = arith.subf %31, %32 : vector<1x64xf32>
      %34 = vector.broadcast %30 : vector<1x64xf32> to vector<512x64xf32>
      %35 = arith.mulf %12, %34 : vector<512x64xf32>
      %36 = vector.broadcast %33 : vector<1x64xf32> to vector<512x64xf32>
      %37 = arith.addf %35, %36 : vector<512x64xf32>
      %cst_22 = arith.constant 0.000000e+00 : f32
      %38 = vector.broadcast %cst_22 : f32 to vector<512x64xf32>
      %39 = arith.maximumf %37, %38 : vector<512x64xf32>
      %40 = arith.truncf %39 : vector<512x64xf32> to vector<512x64xbf16>
      %c0_23 = arith.constant 0 : index
      %c0_24 = arith.constant 0 : index
      %41 = vector.load %arg6[%c0_23, %c0_24] : memref<512x64xbf16, #tpu.memory_space<vmem>>, vector<512x64xbf16>
      tpu.vector_store %arg6[%c0_23, %c0_24], %40 {strides = array<i32>} : memref<512x64xbf16, #tpu.memory_space<vmem>>, vector<512x64xbf16>,
    } else {
    }
    return
  }
  func.func @transform_0(%arg0: i32, %arg1: i32) -> (i32, i32) {
    %c0_i32 = arith.constant 0 : i32
    %c0_i32_0 = arith.constant 0 : i32
    return %c0_i32, %arg1 : i32, i32
  }
  func.func @transform_1(%arg0: i32, %arg1: i32) -> (i32, i32) {
    %c0_i32 = arith.constant 0 : i32
    return %arg1, %arg0 : i32, i32
  }
  func.func @transform_2(%arg0: i32, %arg1: i32) -> (i32, i32) {
    %c0_i32 = arith.constant 0 : i32
    %c0_i32_0 = arith.constant 0 : i32
    return %c0_i32, %arg0 : i32, i32
  }
  func.func @transform_3(%arg0: i32, %arg1: i32) -> (i32, i32) {
    %c0_i32 = arith.constant 0 : i32
    %c0_i32_0 = arith.constant 0 : i32
    return %c0_i32, %arg0 : i32, i32
  }
  func.func @transform_4(%arg0: i32, %arg1: i32) -> (i32, i32) {
    %c0_i32 = arith.constant 0 : i32
    %c0_i32_0 = arith.constant 0 : i32
    return %c0_i32, %arg0 : i32, i32
  }
}

</mosaic_0001>

<llo_original>
// kernel: tpu_custom_call.1
$region0: #{tpu_custom_call.1}
  #allocation0 [shape = 'u32[]', space=smem, size = 0x4, offset = 0x4, fixed_abs, tag = 'smem constant byte address 0x4 - core index']
  #allocation1 [shape = 'u32[144,128]{1,0:T(1,128)}', space=vmem, size = 0x12000, scoped, tag = 'internal scratch']
  #allocation2 [shape = 'f32[512,64]{1,0:T(8,128)}', space=vmem, size = 0x40000, scoped, tag = 'scratch operand']
  %s0 = inlined_call_operand.hbm [shape: bf16[512,256], index: 0, kind: input, shape index: {}]
  %s1 = inlined_call_operand.vmem [shape: bf16[256,64], index: 1, kind: input, shape index: {}]
  %s2 = inlined_call_operand.vmem [shape: f32[1,64], index: 2, kind: input, shape index: {}]
  %s3 = inlined_call_operand.vmem [shape: f32[1,64], index: 3, kind: input, shape index: {}]
  %s4 = inlined_call_operand.vmem [shape: bf16[512,64], index: 4, kind: output, shape index: {}]
  %s5 = sld [smem:[#allocation0]]
  $region38: #{tpu_custom_call.1} parent=0
    _
  %s7 = ssub.s32 1, %s5
  %s8 = scalar_select 0, %s7, %s5
  $region1: #{tpu_custom_call.1} parent=0
    #allocation3 [shape = 'u8[262144]{0}', space=vmem, size = 0x40000, scoped, tag = 'input window, operand 0, single buffered']
    #allocation4 [shape = 's32[1]{0}', space=sflag, size = 0x4, scoped, tag = 'scoped memory for tpu_custom_call.1']
    %9 = vsyncpa [#allocation4], 0
    // Predicated region
    $region2: #{tpu_custom_call.1} parent=1 // pred_check
      _
    $region3: #{tpu_custom_call.1} parent=1 // pred_check_branch
      %11 = sbr.rel (0) target = $region5
    $region4: #{tpu_custom_call.1} parent=1 // pred_region
      %s13 = ssub.s32 8192, 8192
      %14 = vsyncadd [#allocation4], %s13
      %s15 = sshll.u32 [#allocation3], 4
      %s16 = int_to_ptr.vmem [resolvable:$true] %s15
      %21 = dma.hbm_to_vmem [thread:$0]  %s0, 8192, %s16, [#allocation4], 128, 128, 8
    $region5: #{tpu_custom_call.1} parent=1 // pred_fallthru
      _
    // Predicated region
    $region6: #{tpu_custom_call.1} parent=1 // pred_check
      _
    $region7: #{tpu_custom_call.1} parent=1 // pred_check_branch
      %23 = sbr.rel (0) target = $region9
    $region8: #{tpu_custom_call.1} parent=1 // pred_region
      _
    $region9: #{tpu_custom_call.1} parent=1 // pred_fallthru
      _
    // Predicated region
    $region10: #{tpu_custom_call.1} parent=1 // pred_check
      _
    $region11: #{tpu_custom_call.1} parent=1 // pred_check_branch
      %25 = sbr.rel (0) target = $region13
    $region12: #{tpu_custom_call.1} parent=1 // pred_region
      _
    $region13: #{tpu_custom_call.1} parent=1 // pred_fallthru
      _
    // Predicated region
    $region14: #{tpu_custom_call.1} parent=1 // pred_check
      _
    $region15: #{tpu_custom_call.1} parent=1 // pred_check_branch
      %27 = sbr.rel (0) target = $region17
    $region16: #{tpu_custom_call.1} parent=1 // pred_region
      _
    $region17: #{tpu_custom_call.1} parent=1 // pred_fallthru
      _
    // Predicated region
    $region18: #{tpu_custom_call.1} parent=1 // pred_check
      _
    $region19: #{tpu_custom_call.1} parent=1 // pred_check_branch
      %29 = sbr.rel (0) target = $region21
    $region20: #{tpu_custom_call.1} parent=1 // pred_region
      %30 = dma.done [#allocation4], 8192
    $region21: #{tpu_custom_call.1} parent=1 // pred_fallthru
      _
    %p32 = scmp.eq.s32.totalorder 0, 0
    // Predicated region
    $region22: #{tpu_custom_call.1} parent=1 // pred_check
      %p33 = pneg %p32
    $region23: #{tpu_custom_call.1} parent=1 // pred_check_branch
      %35 = sbr.rel (%p33) target = $region25
    $region24: #{tpu_custom_call.1} parent=1 // pred_region
      %vm36 = vcmask 523264
      %37 = vst.msk [vmem:[#allocation2] sm:$0xff] %vm36, 0.0
      %38 = vst.msk [vmem:[#allocation2 + $0x8] sm:$0xff] %vm36, 0.0
      %39 = vst.msk [vmem:[#allocation2 + $0x10] sm:$0xff] %vm36, 0.0
      %40 = vst.msk [vmem:[#allocation2 + $0x18] sm:$0xff] %vm36, 0.0
      %41 = vst.msk [vmem:[#allocation2 + $0x20] sm:$0xff] %vm36, 0.0
      %42 = vst.msk [vmem:[#allocation2 + $0x28] sm:$0xff] %vm36, 0.0
      %43 = vst.msk [vmem:[#allocation2 + $0x30] sm:$0xff] %vm36, 0.0
      %44 = vst.msk [vmem:[#allocation2 + $0x38] sm:$0xff] %vm36, 0.0
      %45 = vst.msk [vmem:[#allocation2 + $0x40] sm:$0xff] %vm36, 0.0
      %46 = vst.msk [vmem:[#allocation2 + $0x48] sm:$0xff] %vm36, 0.0
      %47 = vst.msk [vmem:[#allocation2 + $0x50] sm:$0xff] %vm36, 0.0
      %48 = vst.msk [vmem:[#allocation2 + $0x58] sm:$0xff] %vm36, 0.0
      %49 = vst.msk [vmem:[#allocation2 + $0x60] sm:$0xff] %vm36, 0.0
      %50 = vst.msk [vmem:[#allocation2 + $0x68] sm:$0xff] %vm36, 0.0
      %51 = vst.msk [vmem:[#allocation2 + $0x70] sm:$0xff] %vm36, 0.0
      %52 = vst.msk [vmem:[#allocation2 + $0x78] sm:$0xff] %vm36, 0.0
      %53 = vst.msk [vmem:[#allocation2 + $0x80] sm:$0xff] %vm36, 0.0
      %54 = vst.msk [vmem:[#allocation2 + $0x88] sm:$0xff] %vm36, 0.0
      %55 = vst.msk [vmem:[#allocation2 + $0x90] sm:$0xff] %vm36, 0.0
      %56 = vst.msk [vmem:[#allocation2 + $0x98] sm:$0xff] %vm36, 0.0
      %57 = vst.msk [vmem:[#allocation2 + $0xa0] sm:$0xff] %vm36, 0.0
      %58 = vst.msk [vmem:[#allocation2 + $0xa8] sm:$0xff] %vm36, 0.0
      %59 = vst.msk [vmem:[#allocation2 + $0xb0] sm:$0xff] %vm36, 0.0
      %60 = vst.msk [vmem:[#allocation2 + $0xb8] sm:$0xff] %vm36, 0.0
      %61 = vst.msk [vmem:[#allocation2 + $0xc0] sm:$0xff] %vm36, 0.0
      %62 = vst.msk [vmem:[#allocation2 + $0xc8] sm:$0xff] %vm36, 0.0
      %63 = vst.msk [vmem:[#allocation2 + $0xd0] sm:$0xff] %vm36, 0.0
      %64 = vst.msk [vmem:[#allocation2 + $0xd8] sm:$0xff] %vm36, 0.0
      %65 = vst.msk [vmem:[#allocation2 + $0xe0] sm:$0xff] %vm36, 0.0
      %66 = vst.msk [vmem:[#allocation2 + $0xe8] sm:$0xff] %vm36, 0.0
      %67 = vst.msk [vmem:[#allocation2 + $0xf0] sm:$0xff] %vm36, 0.0
      %68 = vst.msk [vmem:[#allocation2 + $0xf8] sm:$0xff] %vm36, 0.0
      %69 = vst.msk [vmem:[#allocation2 + $0x100] sm:$0xff] %vm36, 0.0
      %70 = vst.msk [vmem:[#allocation2 + $0x108] sm:$0xff] %vm36, 0.0
      %71 = vst.msk [vmem:[#allocation2 + $0x110] sm:$0xff] %vm36, 0.0
      %72 = vst.msk [vmem:[#allocation2 + $0x118] sm:$0xff] %vm36, 0.0
      %73 = vst.msk [vmem:[#allocation2 + $0x120] sm:$0xff] %vm36, 0.0
      %74 = vst.msk [vmem:[#allocation2 + $0x128] sm:$0xff] %vm36, 0.0
      %75 = vst.msk [vmem:[#allocation2 + $0x130] sm:$0xff] %vm36, 0.0
      %76 = vst.msk [vmem:[#allocation2 + $0x138] sm:$0xff] %vm36, 0.0
      %77 = vst.msk [vmem:[#allocation2 + $0x140] sm:$0xff] %vm36, 0.0
      %78 = vst.msk [vmem:[#allocation2 + $0x148] sm:$0xff] %vm36, 0.0
      %79 = vst.msk [vmem:[#allocation2 + $0x150] sm:$0xff] %vm36, 0.0
      %80 = vst.msk [vmem:[#allocation2 + $0x158] sm:$0xff] %vm36, 0.0
      %81 = vst.msk [vmem:[#allocation2 + $0x160] sm:$0xff] %vm36, 0.0
      %82 = vst.msk [vmem:[#allocation2 + $0x168] sm:$0xff] %vm36, 0.0
      %83 = vst.msk [vmem:[#allocation2 + $0x170] sm:$0xff] %vm36, 0.0
      %84 = vst.msk [vmem:[#allocation2 + $0x178] sm:$0xff] %vm36, 0.0
      %85 = vst.msk [vmem:[#allocation2 + $0x180] sm:$0xff] %vm36, 0.0
      %86 = vst.msk [vmem:[#allocation2 + $0x188] sm:$0xff] %vm36, 0.0
      %87 = vst.msk [vmem:[#allocation2 + $0x190] sm:$0xff] %vm36, 0.0
      %88 = vst.msk [vmem:[#allocation2 + $0x198] sm:$0xff] %vm36, 0.0
      %89 = vst.msk [vmem:[#allocation2 + $0x1a0] sm:$0xff] %vm36, 0.0
      %90 = vst.msk [vmem:[#allocation2 + $0x1a8] sm:$0xff] %vm36, 0.0
      %91 = vst.msk [vmem:[#allocation2 + $0x1b0] sm:$0xff] %vm36, 0.0
      %92 = vst.msk [vmem:[#allocation2 + $0x1b8] sm:$0xff] %vm36, 0.0
      %93 = vst.msk [vmem:[#allocation2 + $0x1c0] sm:$0xff] %vm36, 0.0
      %94 = vst.msk [vmem:[#allocation2 + $0x1c8] sm:$0xff] %vm36, 0.0
      %95 = vst.msk [vmem:[#allocation2 + $0x1d0] sm:$0xff] %vm36, 0.0
      %96 = vst.msk [vmem:[#allocation2 + $0x1d8] sm:$0xff] %vm36, 0.0
      %97 = vst.msk [vmem:[#allocation2 + $0x1e0] sm:$0xff] %vm36, 0.0
      %98 = vst.msk [vmem:[#allocation2 + $0x1e8] sm:$0xff] %vm36, 0.0
      %99 = vst.msk [vmem:[#allocation2 + $0x1f0] sm:$0xff] %vm36, 0.0
      %100 = vst.msk [vmem:[#allocation2 + $0x1f8] sm:$0xff] %vm36, 0.0
    $region25: #{tpu_custom_call.1} parent=1 // pred_fallthru
      _
    %v101 = vld [vmem:[#allocation2] sm:$0xff]
    %v102 = vld [vmem:[#allocation2 + $0x8] sm:$0xff]
    %v103 = vld [vmem:[#allocation2 + $0x10] sm:$0xff]
    %v104 = vld [vmem:[#allocation2 + $0x18] sm:$0xff]
    %v105 = vld [vmem:[#allocation2 + $0x20] sm:$0xff]
    %v106 = vld [vmem:[#allocation2 + $0x28] sm:$0xff]
    %v107 = vld [vmem:[#allocation2 + $0x30] sm:$0xff]
    %v108 = vld [vmem:[#allocation2 + $0x38] sm:$0xff]
    %v109 = vld [vmem:[#allocation2 + $0x40] sm:$0xff]
    %v110 = vld [vmem:[#allocation2 + $0x48] sm:$0xff]
    %v111 = vld [vmem:[#allocation2 + $0x50] sm:$0xff]
    %v112 = vld [vmem:[#allocation2 + $0x58] sm:$0xff]
    %v113 = vld [vmem:[#allocation2 + $0x60] sm:$0xff]
    %v114 = vld [vmem:[#allocation2 + $0x68] sm:$0xff]
    %v115 = vld [vmem:[#allocation2 + $0x70] sm:$0xff]
    %v116 = vld [vmem:[#allocation2 + $0x78] sm:$0xff]
    %v117 = vld [vmem:[#allocation2 + $0x80] sm:$0xff]
    %v118 = vld [vmem:[#allocation2 + $0x88] sm:$0xff]
    %v119 = vld [vmem:[#allocation2 + $0x90] sm:$0xff]
    %v120 = vld [vmem:[#allocation2 + $0x98] sm:$0xff]
    %v121 = vld [vmem:[#allocation2 + $0xa0] sm:$0xff]
    %v122 = vld [vmem:[#allocation2 + $0xa8] sm:$0xff]
    %v123 = vld [vmem:[#allocation2 + $0xb0] sm:$0xff]
    %v124 = vld [vmem:[#allocation2 + $0xb8] sm:$0xff]
    %v125 = vld [vmem:[#allocation2 + $0xc0] sm:$0xff]
    %v126 = vld [vmem:[#allocation2 + $0xc8] sm:$0xff]
    %v127 = vld [vmem:[#allocation2 + $0xd0] sm:$0xff]
    %v128 = vld [vmem:[#allocation2 + $0xd8] sm:$0xff]
    %v129 = vld [vmem:[#allocation2 + $0xe0] sm:$0xff]
    %v130 = vld [vmem:[#allocation2 + $0xe8] sm:$0xff]
    %v131 = vld [vmem:[#allocation2 + $0xf0] sm:$0xff]
    %v132 = vld [vmem:[#allocation2 + $0xf8] sm:$0xff]
    %v133 = vld [vmem:[#allocation2 + $0x100] sm:$0xff]
    %v134 = vld [vmem:[#allocation2 + $0x108] sm:$0xff]
    %v135 = vld [vmem:[#allocation2 + $0x110] sm:$0xff]
    %v136 = vld [vmem:[#allocation2 + $0x118] sm:$0xff]
    %v137 = vld [vmem:[#allocation2 + $0x120] sm:$0xff]
    %v138 = vld [vmem:[#allocation2 + $0x128] sm:$0xff]
    %v139 = vld [vmem:[#allocation2 + $0x130] sm:$0xff]
    %v140 = vld [vmem:[#allocation2 + $0x138] sm:$0xff]
    %v141 = vld [vmem:[#allocation2 + $0x140] sm:$0xff]
    %v142 = vld [vmem:[#allocation2 + $0x148] sm:$0xff]
    %v143 = vld [vmem:[#allocation2 + $0x150] sm:$0xff]
    %v144 = vld [vmem:[#allocation2 + $0x158] sm:$0xff]
    %v145 = vld [vmem:[#allocation2 + $0x160] sm:$0xff]
    %v146 = vld [vmem:[#allocation2 + $0x168] sm:$0xff]
    %v147 = vld [vmem:[#allocation2 + $0x170] sm:$0xff]
    %v148 = vld [vmem:[#allocation2 + $0x178] sm:$0xff]
    %v149 = vld [vmem:[#allocation2 + $0x180] sm:$0xff]
    %v150 = vld [vmem:[#allocation2 + $0x188] sm:$0xff]
    %v151 = vld [vmem:[#allocation2 + $0x190] sm:$0xff]
    %v152 = vld [vmem:[#allocation2 + $0x198] sm:$0xff]
    %v153 = vld [vmem:[#allocation2 + $0x1a0] sm:$0xff]
    %v154 = vld [vmem:[#allocation2 + $0x1a8] sm:$0xff]
    %v155 = vld [vmem:[#allocation2 + $0x1b0] sm:$0xff]
    %v156 = vld [vmem:[#allocation2 + $0x1b8] sm:$0xff]
    %v157 = vld [vmem:[#allocation2 + $0x1c0] sm:$0xff]
    %v158 = vld [vmem:[#allocation2 + $0x1c8] sm:$0xff]
    %v159 = vld [vmem:[#allocation2 + $0x1d0] sm:$0xff]
    %v160 = vld [vmem:[#allocation2 + $0x1d8] sm:$0xff]
    %v161 = vld [vmem:[#allocation2 + $0x1e0] sm:$0xff]
    %v162 = vld [vmem:[#allocation2 + $0x1e8] sm:$0xff]
    %v163 = vld [vmem:[#allocation2 + $0x1f0] sm:$0xff]
    %v164 = vld [vmem:[#allocation2 + $0x1f8] sm:$0xff]
    %v165 = vld [vmem:[#allocation3] sm:$0xff]
    %v166 = vld [vmem:[#allocation3 + $0x8] sm:$0xff]
    %v167 = vld [vmem:[#allocation3 + $0x10] sm:$0xff]
    %v168 = vld [vmem:[#allocation3 + $0x18] sm:$0xff]
    %v169 = vld [vmem:[#allocation3 + $0x20] sm:$0xff]
    %v170 = vld [vmem:[#allocation3 + $0x28] sm:$0xff]
    %v171 = vld [vmem:[#allocation3 + $0x30] sm:$0xff]
    %v172 = vld [vmem:[#allocation3 + $0x38] sm:$0xff]
    %v173 = vld [vmem:[#allocation3 + $0x40] sm:$0xff]
    %v174 = vld [vmem:[#allocation3 + $0x48] sm:$0xff]
    %v175 = vld [vmem:[#allocation3 + $0x50] sm:$0xff]
    %v176 = vld [vmem:[#allocation3 + $0x58] sm:$0xff]
    %v177 = vld [vmem:[#allocation3 + $0x60] sm:$0xff]
    %v178 = vld [vmem:[#allocation3 + $0x68] sm:$0xff]
    %v179 = vld [vmem:[#allocation3 + $0x70] sm:$0xff]
    %v180 = vld [vmem:[#allocation3 + $0x78] sm:$0xff]
    %v181 = vld [vmem:[#allocation3 + $0x80] sm:$0xff]
    %v182 = vld [vmem:[#allocation3 + $0x88] sm:$0xff]
    %v183 = vld [vmem:[#allocation3 + $0x90] sm:$0xff]
    %v184 = vld [vmem:[#allocation3 + $0x98] sm:$0xff]
    %v185 = vld [vmem:[#allocation3 + $0xa0] sm:$0xff]
    %v186 = vld [vmem:[#allocation3 + $0xa8] sm:$0xff]
    %v187 = vld [vmem:[#allocation3 + $0xb0] sm:$0xff]
    %v188 = vld [vmem:[#allocation3 + $0xb8] sm:$0xff]
    %v189 = vld [vmem:[#allocation3 + $0xc0] sm:$0xff]
    %v190 = vld [vmem:[#allocation3 + $0xc8] sm:$0xff]
    %v191 = vld [vmem:[#allocation3 + $0xd0] sm:$0xff]
    %v192 = vld [vmem:[#allocation3 + $0xd8] sm:$0xff]
    %v193 = vld [vmem:[#allocation3 + $0xe0] sm:$0xff]
    %v194 = vld [vmem:[#allocation3 + $0xe8] sm:$0xff]
    %v195 = vld [vmem:[#allocation3 + $0xf0] sm:$0xff]
    %v196 = vld [vmem:[#allocation3 + $0xf8] sm:$0xff]
    %v197 = vld [vmem:[#allocation3 + $0x100] sm:$0xff]
    %v198 = vld [vmem:[#allocation3 + $0x108] sm:$0xff]
    %v199 = vld [vmem:[#allocation3 + $0x110] sm:$0xff]
    %v200 = vld [vmem:[#allocation3 + $0x118] sm:$0xff]
    %v201 = vld [vmem:[#allocation3 + $0x120] sm:$0xff]
    %v202 = vld [vmem:[#allocation3 + $0x128] sm:$0xff]
    %v203 = vld [vmem:[#allocation3 + $0x130] sm:$0xff]
    %v204 = vld [vmem:[#allocation3 + $0x138] sm:$0xff]
    %v205 = vld [vmem:[#allocation3 + $0x140] sm:$0xff]
    %v206 = vld [vmem:[#allocation3 + $0x148] sm:$0xff]
    %v207 = vld [vmem:[#allocation3 + $0x150] sm:$0xff]
    %v208 = vld [vmem:[#allocation3 + $0x158] sm:$0xff]
    %v209 = vld [vmem:[#allocation3 + $0x160] sm:$0xff]
    %v210 = vld [vmem:[#allocation3 + $0x168] sm:$0xff]
    %v211 = vld [vmem:[#allocation3 + $0x170] sm:$0xff]
    %v212 = vld [vmem:[#allocation3 + $0x178] sm:$0xff]
    %v213 = vld [vmem:[#allocation3 + $0x180] sm:$0xff]
    %v214 = vld [vmem:[#allocation3 + $0x188] sm:$0xff]
    %v215 = vld [vmem:[#allocation3 + $0x190] sm:$0xff]
    %v216 = vld [vmem:[#allocation3 + $0x198] sm:$0xff]
    %v217 = vld [vmem:[#allocation3 + $0x1a0] sm:$0xff]
    %v218 = vld [vmem:[#allocation3 + $0x1a8] sm:$0xff]
    %v219 = vld [vmem:[#allocation3 + $0x1b0] sm:$0xff]
    %v220 = vld [vmem:[#allocation3 + $0x1b8] sm:$0xff]
    %v221 = vld [vmem:[#allocation3 + $0x1c0] sm:$0xff]
    %v222 = vld [vmem:[#allocation3 + $0x1c8] sm:$0xff]
    %v223 = vld [vmem:[#allocation3 + $0x1d0] sm:$0xff]
    %v224 = vld [vmem:[#allocation3 + $0x1d8] sm:$0xff]
    %v225 = vld [vmem:[#allocation3 + $0x1e0] sm:$0xff]
    %v226 = vld [vmem:[#allocation3 + $0x1e8] sm:$0xff]
    %v227 = vld [vmem:[#allocation3 + $0x1f0] sm:$0xff]
    %v228 = vld [vmem:[#allocation3 + $0x1f8] sm:$0xff]
    %v229 = vld [vmem:[%s1] sm:$0xf]
    %v230 = vld [vmem:[%s1 + $0x4] sm:$0xf]
    %v231 = vld [vmem:[%s1 + $0x8] sm:$0xf]
    %v232 = vld [vmem:[%s1 + $0xc] sm:$0xf]
    %v233 = vld [vmem:[%s1 + $0x10] sm:$0xf]
    %v234 = vld [vmem:[%s1 + $0x14] sm:$0xf]
    %v235 = vld [vmem:[%s1 + $0x18] sm:$0xf]
    %v236 = vld [vmem:[%s1 + $0x1c] sm:$0xf]
    %v237 = vld [vmem:[%s1 + $0x20] sm:$0xf]
    %v238 = vld [vmem:[%s1 + $0x24] sm:$0xf]
    %v239 = vld [vmem:[%s1 + $0x28] sm:$0xf]
    %v240 = vld [vmem:[%s1 + $0x2c] sm:$0xf]
    %v241 = vld [vmem:[%s1 + $0x30] sm:$0xf]
    %v242 = vld [vmem:[%s1 + $0x34] sm:$0xf]
    %v243 = vld [vmem:[%s1 + $0x38] sm:$0xf]
    %v244 = vld [vmem:[%s1 + $0x3c] sm:$0xf]
    %v245 = vld [vmem:[%s1 + $0x40] sm:$0xf]
    %v246 = vld [vmem:[%s1 + $0x44] sm:$0xf]
    %v247 = vld [vmem:[%s1 + $0x48] sm:$0xf]
    %v248 = vld [vmem:[%s1 + $0x4c] sm:$0xf]
    %v249 = vld [vmem:[%s1 + $0x50] sm:$0xf]
    %v250 = vld [vmem:[%s1 + $0x54] sm:$0xf]
    %v251 = vld [vmem:[%s1 + $0x58] sm:$0xf]
    %v252 = vld [vmem:[%s1 + $0x5c] sm:$0xf]
    %v253 = vld [vmem:[%s1 + $0x60] sm:$0xf]
    %v254 = vld [vmem:[%s1 + $0x64] sm:$0xf]
    %v255 = vld [vmem:[%s1 + $0x68] sm:$0xf]
    %v256 = vld [vmem:[%s1 + $0x6c] sm:$0xf]
    %v257 = vld [vmem:[%s1 + $0x70] sm:$0xf]
    %v258 = vld [vmem:[%s1 + $0x74] sm:$0xf]
    %v259 = vld [vmem:[%s1 + $0x78] sm:$0xf]
    %v260 = vld [vmem:[%s1 + $0x7c] sm:$0xf]
    %v325 = vunpack.c.l.b16 %v165
    %v326 = vunpack.c.h.b16 %v165
    %v327 = vunpack.c.l.b16 %v166
    %v328 = vunpack.c.h.b16 %v166
    %v329 = vunpack.c.l.b16 %v167
    %v330 = vunpack.c.h.b16 %v167
    %v331 = vunpack.c.l.b16 %v168
    %v332 = vunpack.c.h.b16 %v168
    %v333 = vunpack.c.l.b16 %v169
    %v334 = vunpack.c.h.b16 %v169
    %v335 = vunpack.c.l.b16 %v170
    %v336 = vunpack.c.h.b16 %v170
    %v337 = vunpack.c.l.b16 %v171
    %v338 = vunpack.c.h.b16 %v171
    %v339 = vunpack.c.l.b16 %v172
    %v340 = vunpack.c.h.b16 %v172
    %v341 = vunpack.c.l.b16 %v173
    %v342 = vunpack.c.h.b16 %v173
    %v343 = vunpack.c.l.b16 %v174
    %v344 = vunpack.c.h.b16 %v174
    %v345 = vunpack.c.l.b16 %v175
    %v346 = vunpack.c.h.b16 %v175
    %v347 = vunpack.c.l.b16 %v176
    %v348 = vunpack.c.h.b16 %v176
    %v349 = vunpack.c.l.b16 %v177
    %v350 = vunpack.c.h.b16 %v177
    %v351 = vunpack.c.l.b16 %v178
    %v352 = vunpack.c.h.b16 %v178
    %v353 = vunpack.c.l.b16 %v179
    %v354 = vunpack.c.h.b16 %v179
    %v355 = vunpack.c.l.b16 %v180
    %v356 = vunpack.c.h.b16 %v180
    %v357 = vunpack.c.l.b16 %v181
    %v358 = vunpack.c.h.b16 %v181
    %v359 = vunpack.c.l.b16 %v182
    %v360 = vunpack.c.h.b16 %v182
    %v361 = vunpack.c.l.b16 %v183
    %v362 = vunpack.c.h.b16 %v183
    %v363 = vunpack.c.l.b16 %v184
    %v364 = vunpack.c.h.b16 %v184
    %v365 = vunpack.c.l.b16 %v185
    %v366 = vunpack.c.h.b16 %v185
    %v367 = vunpack.c.l.b16 %v186
    %v368 = vunpack.c.h.b16 %v186
    %v369 = vunpack.c.l.b16 %v187
    %v370 = vunpack.c.h.b16 %v187
    %v371 = vunpack.c.l.b16 %v188
    %v372 = vunpack.c.h.b16 %v188
    %v373 = vunpack.c.l.b16 %v189
    %v374 = vunpack.c.h.b16 %v189
    %v375 = vunpack.c.l.b16 %v190
    %v376 = vunpack.c.h.b16 %v190
    %v377 = vunpack.c.l.b16 %v191
    %v378 = vunpack.c.h.b16 %v191
    %v379 = vunpack.c.l.b16 %v192
    %v380 = vunpack.c.h.b16 %v192
    %v381 = vunpack.c.l.b16 %v193
    %v382 = vunpack.c.h.b16 %v193
    %v383 = vunpack.c.l.b16 %v194
    %v384 = vunpack.c.h.b16 %v194
    %v385 = vunpack.c.l.b16 %v195
    %v386 = vunpack.c.h.b16 %v195
    %v387 = vunpack.c.l.b16 %v196
    %v388 = vunpack.c.h.b16 %v196
    %v389 = vunpack.c.l.b16 %v197
    %v390 = vunpack.c.h.b16 %v197
    %v391 = vunpack.c.l.b16 %v198
    %v392 = vunpack.c.h.b16 %v198
    %v393 = vunpack.c.l.b16 %v199
    %v394 = vunpack.c.h.b16 %v199
    %v395 = vunpack.c.l.b16 %v200
    %v396 = vunpack.c.h.b16 %v200
    %v397 = vunpack.c.l.b16 %v201
    %v398 = vunpack.c.h.b16 %v201
    %v399 = vunpack.c.l.b16 %v202
    %v400 = vunpack.c.h.b16 %v202
    %v401 = vunpack.c.l.b16 %v203
    %v402 = vunpack.c.h.b16 %v203
    %v403 = vunpack.c.l.b16 %v204
    %v404 = vunpack.c.h.b16 %v204
    %v405 = vunpack.c.l.b16 %v205
    %v406 = vunpack.c.h.b16 %v205
    %v407 = vunpack.c.l.b16 %v206
    %v408 = vunpack.c.h.b16 %v206
    %v409 = vunpack.c.l.b16 %v207
    %v410 = vunpack.c.h.b16 %v207
    %v411 = vunpack.c.l.b16 %v208
    %v412 = vunpack.c.h.b16 %v208
    %v413 = vunpack.c.l.b16 %v209
    %v414 = vunpack.c.h.b16 %v209
    %v415 = vunpack.c.l.b16 %v210
    %v416 = vunpack.c.h.b16 %v210
    %v417 = vunpack.c.l.b16 %v211
    %v418 = vunpack.c.h.b16 %v211
    %v419 = vunpack.c.l.b16 %v212
    %v420 = vunpack.c.h.b16 %v212
    %v421 = vunpack.c.l.b16 %v213
    %v422 = vunpack.c.h.b16 %v213
    %v423 = vunpack.c.l.b16 %v214
    %v424 = vunpack.c.h.b16 %v214
    %v425 = vunpack.c.l.b16 %v215
    %v426 = vunpack.c.h.b16 %v215
    %v427 = vunpack.c.l.b16 %v216
    %v428 = vunpack.c.h.b16 %v216
    %v429 = vunpack.c.l.b16 %v217
    %v430 = vunpack.c.h.b16 %v217
    %v431 = vunpack.c.l.b16 %v218
    %v432 = vunpack.c.h.b16 %v218
    %v433 = vunpack.c.l.b16 %v219
    %v434 = vunpack.c.h.b16 %v219
    %v435 = vunpack.c.l.b16 %v220
    %v436 = vunpack.c.h.b16 %v220
    %v437 = vunpack.c.l.b16 %v221
    %v438 = vunpack.c.h.b16 %v221
    %v439 = vunpack.c.l.b16 %v222
    %v440 = vunpack.c.h.b16 %v222
    %v441 = vunpack.c.l.b16 %v223
    %v442 = vunpack.c.h.b16 %v223
    %v443 = vunpack.c.l.b16 %v224
    %v444 = vunpack.c.h.b16 %v224
    %v445 = vunpack.c.l.b16 %v225
    %v446 = vunpack.c.h.b16 %v225
    %v447 = vunpack.c.l.b16 %v226
    %v448 = vunpack.c.h.b16 %v226
    %v449 = vunpack.c.l.b16 %v227
    %v450 = vunpack.c.h.b16 %v227
    %v451 = vunpack.c.l.b16 %v228
    %v452 = vunpack.c.h.b16 %v228
    %v453 = vpack.c.b16 %v327, %v325
    %v454 = vpack.c.b16 %v328, %v326
    %v455 = vpack.c.b16 %v331, %v329
    %v456 = vpack.c.b16 %v332, %v330
    %v457 = vpack.c.b16 %v335, %v333
    %v458 = vpack.c.b16 %v336, %v334
    %v459 = vpack.c.b16 %v339, %v337
    %v460 = vpack.c.b16 %v340, %v338
    %v461 = vpack.c.b16 %v343, %v341
    %v462 = vpack.c.b16 %v344, %v342
    %v463 = vpack.c.b16 %v347, %v345
    %v464 = vpack.c.b16 %v348, %v346
    %v465 = vpack.c.b16 %v351, %v349
    %v466 = vpack.c.b16 %v352, %v350
    %v467 = vpack.c.b16 %v355, %v353
    %v468 = vpack.c.b16 %v356, %v354
    %v469 = vpack.c.b16 %v359, %v357
    %v470 = vpack.c.b16 %v360, %v358
    %v471 = vpack.c.b16 %v363, %v361
    %v472 = vpack.c.b16 %v364, %v362
    %v473 = vpack.c.b16 %v367, %v365
    %v474 = vpack.c.b16 %v368, %v366
    %v475 = vpack.c.b16 %v371, %v369
    %v476 = vpack.c.b16 %v372, %v370
    %v477 = vpack.c.b16 %v375, %v373
    %v478 = vpack.c.b16 %v376, %v374
    %v479 = vpack.c.b16 %v379, %v377
    %v480 = vpack.c.b16 %v380, %v378
    %v481 = vpack.c.b16 %v383, %v381
    %v482 = vpack.c.b16 %v384, %v382
    %v483 = vpack.c.b16 %v387, %v385
    %v484 = vpack.c.b16 %v388, %v386
    %v485 = vpack.c.b16 %v391, %v389
    %v486 = vpack.c.b16 %v392, %v390
    %v487 = vpack.c.b16 %v395, %v393
    %v488 = vpack.c.b16 %v396, %v394
    %v489 = vpack.c.b16 %v399, %v397
    %v490 = vpack.c.b16 %v400, %v398
    %v491 = vpack.c.b16 %v403, %v401
    %v492 = vpack.c.b16 %v404, %v402
    %v493 = vpack.c.b16 %v407, %v405
    %v494 = vpack.c.b16 %v408, %v406
    %v495 = vpack.c.b16 %v411, %v409
    %v496 = vpack.c.b16 %v412, %v410
    %v497 = vpack.c.b16 %v415, %v413
    %v498 = vpack.c.b16 %v416, %v414
    %v499 = vpack.c.b16 %v419, %v417
    %v500 = vpack.c.b16 %v420, %v418
    %v501 = vpack.c.b16 %v423, %v421
    %v502 = vpack.c.b16 %v424, %v422
    %v503 = vpack.c.b16 %v427, %v425
    %v504 = vpack.c.b16 %v428, %v426
    %v505 = vpack.c.b16 %v431, %v429
    %v506 = vpack.c.b16 %v432, %v430
    %v507 = vpack.c.b16 %v435, %v433
    %v508 = vpack.c.b16 %v436, %v434
    %v509 = vpack.c.b16 %v439, %v437
    %v510 = vpack.c.b16 %v440, %v438
    %v511 = vpack.c.b16 %v443, %v441
    %v512 = vpack.c.b16 %v444, %v442
    %v513 = vpack.c.b16 %v447, %v445
    %v514 = vpack.c.b16 %v448, %v446
    %v515 = vpack.c.b16 %v451, %v449
    %v516 = vpack.c.b16 %v452, %v450
    %v613 = vunpack.c.l.b16 %v229
    %v614 = vunpack.c.l.b16 %v230
    %v615 = vunpack.c.l.b16 %v231
    %v616 = vunpack.c.l.b16 %v232
    %v617 = vunpack.c.l.b16 %v233
    %v618 = vunpack.c.l.b16 %v234
    %v619 = vunpack.c.l.b16 %v235
    %v620 = vunpack.c.l.b16 %v236
    %v621 = vunpack.c.l.b16 %v237
    %v622 = vunpack.c.l.b16 %v238
    %v623 = vunpack.c.l.b16 %v239
    %v624 = vunpack.c.l.b16 %v240
    %v625 = vunpack.c.l.b16 %v241
    %v626 = vunpack.c.l.b16 %v242
    %v627 = vunpack.c.l.b16 %v243
    %v628 = vunpack.c.l.b16 %v244
    %v629 = vunpack.c.l.b16 %v245
    %v630 = vunpack.c.l.b16 %v246
    %v631 = vunpack.c.l.b16 %v247
    %v632 = vunpack.c.l.b16 %v248
    %v633 = vunpack.c.l.b16 %v249
    %v634 = vunpack.c.l.b16 %v250
    %v635 = vunpack.c.l.b16 %v251
    %v636 = vunpack.c.l.b16 %v252
    %v637 = vunpack.c.l.b16 %v253
    %v638 = vunpack.c.l.b16 %v254
    %v639 = vunpack.c.l.b16 %v255
    %v640 = vunpack.c.l.b16 %v256
    %v641 = vunpack.c.l.b16 %v257
    %v642 = vunpack.c.l.b16 %v258
    %v643 = vunpack.c.l.b16 %v259
    %v644 = vunpack.c.l.b16 %v260
    %v645 = vpack.c.b16 %v614, %v613
    %v646 = vpack.c.b16 %v616, %v615
    %v647 = vpack.c.b16 %v618, %v617
    %v648 = vpack.c.b16 %v620, %v619
    %v649 = vpack.c.b16 %v622, %v621
    %v650 = vpack.c.b16 %v624, %v623
    %v651 = vpack.c.b16 %v626, %v625
    %v652 = vpack.c.b16 %v628, %v627
    %v653 = vpack.c.b16 %v630, %v629
    %v654 = vpack.c.b16 %v632, %v631
    %v655 = vpack.c.b16 %v634, %v633
    %v656 = vpack.c.b16 %v636, %v635
    %v657 = vpack.c.b16 %v638, %v637
    %v658 = vpack.c.b16 %v640, %v639
    %v659 = vpack.c.b16 %v642, %v641
    %v660 = vpack.c.b16 %v644, %v643
    %677 = vmatprep.subr.bf16.mxu0 0
    %678 = vmatpush1.bf16.msra.mxu0 %v652
    %679 = vmatprep.subr.bf16.mxu0 0
    %680 = vmatpush1.bf16.msra.mxu0 %v651
    %681 = vmatprep.subr.bf16.mxu0 0
    %682 = vmatpush1.bf16.msra.mxu0 %v650
    %683 = vmatprep.subr.bf16.mxu0 0
    %684 = vmatpush1.bf16.msra.mxu0 %v649
    %685 = vmatprep.subr.bf16.mxu0 0
    %686 = vmatpush1.bf16.msra.mxu0 %v648
    %687 = vmatprep.subr.bf16.mxu0 0
    %688 = vmatpush1.bf16.msra.mxu0 %v647
    %689 = vmatprep.subr.bf16.mxu0 0
    %690 = vmatpush1.bf16.msra.mxu0 %v646
    %691 = vmatprep.subr.bf16.mxu0 0
    %692 = vmatpush1.bf16.msra.mxu0 %v645
    %693 = vmatprep.subr.bf16.mxu0 0
    %694 = vmatpush2.bf16.msra.mxu0 %v660
    %695 = vmatprep.subr.bf16.mxu0 0
    %696 = vmatpush2.bf16.msra.mxu0 %v659
    %697 = vmatprep.subr.bf16.mxu0 0
    %698 = vmatpush2.bf16.msra.mxu0 %v658
    %699 = vmatprep.subr.bf16.mxu0 0
    %700 = vmatpush2.bf16.msra.mxu0 %v657
    %701 = vmatprep.subr.bf16.mxu0 0
    %702 = vmatpush2.bf16.msra.mxu0 %v656
    %703 = vmatprep.subr.bf16.mxu0 0
    %704 = vmatpush2.bf16.msra.mxu0 %v655
    %705 = vmatprep.subr.bf16.mxu0 0
    %706 = vmatpush2.bf16.msra.mxu0 %v654
    %707 = vmatprep.subr.bf16.mxu0 0
    %708 = vmatpush2.bf16.msra.mxu0 %v653
    %709 = vmatprep.mubr.bf16.mxu0 %v454
    %710 = vmatmul.mubr.bf16.gmra.mxu0 %v453
    %v711 = vpop.f32.mrf.mxu0
    %v712 = vadd.f32 0.0, %v711
    %v713 = vpop.f32.mrf.mxu0
    %v714 = vpop.f32.mrf.mxu0
    %v715 = vadd.f32 0.0, %v714
    %v716 = vpop.f32.mrf.mxu0
    %717 = vmatprep.mubr.bf16.mxu0 %v456
    %718 = vmatmul.mubr.bf16.gmra.mxu0 %v455
    %v719 = vpop.f32.mrf.mxu0
    %v720 = vadd.f32 0.0, %v719
    %v721 = vpop.f32.mrf.mxu0
    %v722 = vpop.f32.mrf.mxu0
    %v723 = vadd.f32 0.0, %v722
    %v724 = vpop.f32.mrf.mxu0
    %725 = vmatprep.mubr.bf16.mxu0 %v458
    %726 = vmatmul.mubr.bf16.gmra.mxu0 %v457
    %v727 = vpop.f32.mrf.mxu0
    %v728 = vadd.f32 0.0, %v727
    %v729 = vpop.f32.mrf.mxu0
    %v730 = vpop.f32.mrf.mxu0
    %v731 = vadd.f32 0.0, %v730
    %v732 = vpop.f32.mrf.mxu0
    %733 = vmatprep.mubr.bf16.mxu0 %v460
    %734 = vmatmul.mubr.bf16.gmra.mxu0 %v459
    %v735 = vpop.f32.mrf.mxu0
    %v736 = vadd.f32 0.0, %v735
    %v737 = vpop.f32.mrf.mxu0
    %v738 = vpop.f32.mrf.mxu0
    %v739 = vadd.f32 0.0, %v738
    %v740 = vpop.f32.mrf.mxu0
    %741 = vmatprep.mubr.bf16.mxu0 %v462
    %742 = vmatmul.mubr.bf16.gmra.mxu0 %v461
    %v743 = vpop.f32.mrf.mxu0
    %v744 = vadd.f32 0.0, %v743
    %v745 = vpop.f32.mrf.mxu0
    %v746 = vpop.f32.mrf.mxu0
    %v747 = vadd.f32 0.0, %v746
    %v748 = vpop.f32.mrf.mxu0
    %749 = vmatprep.mubr.bf16.mxu0 %v464
    %750 = vmatmul.mubr.bf16.gmra.mxu0 %v463
    %v751 = vpop.f32.mrf.mxu0
    %v752 = vadd.f32 0.0, %v751
    %v753 = vpop.f32.mrf.mxu0
    %v754 = vpop.f32.mrf.mxu0
    %v755 = vadd.f32 0.0, %v754
    %v756 = vpop.f32.mrf.mxu0
    %757 = vmatprep.mubr.bf16.mxu0 %v466
    %758 = vmatmul.mubr.bf16.gmra.mxu0 %v465
    %v759 = vpop.f32.mrf.mxu0
    %v760 = vadd.f32 0.0, %v759
    %v761 = vpop.f32.mrf.mxu0
    %v762 = vpop.f32.mrf.mxu0
    %v763 = vadd.f32 0.0, %v762
    %v764 = vpop.f32.mrf.mxu0
    %765 = vmatprep.mubr.bf16.mxu0 %v468
    %766 = vmatmul.mubr.bf16.gmra.mxu0 %v467
    %v767 = vpop.f32.mrf.mxu0
    %v768 = vadd.f32 0.0, %v767
    %v769 = vpop.f32.mrf.mxu0
    %v770 = vpop.f32.mrf.mxu0
    %v771 = vadd.f32 0.0, %v770
    %v772 = vpop.f32.mrf.mxu0
    %773 = vmatprep.mubr.bf16.mxu0 %v470
    %774 = vmatmul.mubr.bf16.gmra.mxu0 %v469
    %v775 = vpop.f32.mrf.mxu0
    %v776 = vadd.f32 0.0, %v775
    %v777 = vpop.f32.mrf.mxu0
    %v778 = vpop.f32.mrf.mxu0
    %v779 = vadd.f32 0.0, %v778
    %v780 = vpop.f32.mrf.mxu0
    %781 = vmatprep.mubr.bf16.mxu0 %v472
    %782 = vmatmul.mubr.bf16.gmra.mxu0 %v471
    %v783 = vpop.f32.mrf.mxu0
    %v784 = vadd.f32 0.0, %v783
    %v785 = vpop.f32.mrf.mxu0
    %v786 = vpop.f32.mrf.mxu0
    %v787 = vadd.f32 0.0, %v786
    %v788 = vpop.f32.mrf.mxu0
    %789 = vmatprep.mubr.bf16.mxu0 %v474
    %790 = vmatmul.mubr.bf16.gmra.mxu0 %v473
    %v791 = vpop.f32.mrf.mxu0
    %v792 = vadd.f32 0.0, %v791
    %v793 = vpop.f32.mrf.mxu0
    %v794 = vpop.f32.mrf.mxu0
    %v795 = vadd.f32 0.0, %v794
    %v796 = vpop.f32.mrf.mxu0
    %797 = vmatprep.mubr.bf16.mxu0 %v476
    %798 = vmatmul.mubr.bf16.gmra.mxu0 %v475
    %v799 = vpop.f32.mrf.mxu0
    %v800 = vadd.f32 0.0, %v799
    %v801 = vpop.f32.mrf.mxu0
    %v802 = vpop.f32.mrf.mxu0
    %v803 = vadd.f32 0.0, %v802
    %v804 = vpop.f32.mrf.mxu0
    %805 = vmatprep.mubr.bf16.mxu0 %v478
    %806 = vmatmul.mubr.bf16.gmra.mxu0 %v477
    %v807 = vpop.f32.mrf.mxu0
    %v808 = vadd.f32 0.0, %v807
    %v809 = vpop.f32.mrf.mxu0
    %v810 = vpop.f32.mrf.mxu0
    %v811 = vadd.f32 0.0, %v810
    %v812 = vpop.f32.mrf.mxu0
    %813 = vmatprep.mubr.bf16.mxu0 %v480
    %814 = vmatmul.mubr.bf16.gmra.mxu0 %v479
    %v815 = vpop.f32.mrf.mxu0
    %v816 = vadd.f32 0.0, %v815
    %v817 = vpop.f32.mrf.mxu0
    %v818 = vpop.f32.mrf.mxu0
    %v819 = vadd.f32 0.0, %v818
    %v820 = vpop.f32.mrf.mxu0
    %821 = vmatprep.mubr.bf16.mxu0 %v482
    %822 = vmatmul.mubr.bf16.gmra.mxu0 %v481
    %v823 = vpop.f32.mrf.mxu0
    %v824 = vadd.f32 0.0, %v823
    %v825 = vpop.f32.mrf.mxu0
    %v826 = vpop.f32.mrf.mxu0
    %v827 = vadd.f32 0.0, %v826
    %v828 = vpop.f32.mrf.mxu0
    %829 = vmatprep.mubr.bf16.mxu0 %v484
    %830 = vmatmul.mubr.bf16.gmra.mxu0 %v483
    %v831 = vpop.f32.mrf.mxu0
    %v832 = vadd.f32 0.0, %v831
    %v833 = vpop.f32.mrf.mxu0
    %v834 = vpop.f32.mrf.mxu0
    %v835 = vadd.f32 0.0, %v834
    %v836 = vpop.f32.mrf.mxu0
    %837 = vmatprep.mubr.bf16.mxu0 %v486
    %838 = vmatmul.mubr.bf16.gmra.mxu0 %v485
    %v839 = vpop.f32.mrf.mxu0
    %v840 = vadd.f32 0.0, %v839
    %v841 = vpop.f32.mrf.mxu0
    %v842 = vpop.f32.mrf.mxu0
    %v843 = vadd.f32 0.0, %v842
    %v844 = vpop.f32.mrf.mxu0
    %845 = vmatprep.mubr.bf16.mxu0 %v488
    %846 = vmatmul.mubr.bf16.gmra.mxu0 %v487
    %v847 = vpop.f32.mrf.mxu0
    %v848 = vadd.f32 0.0, %v847
    %v849 = vpop.f32.mrf.mxu0
    %v850 = vpop.f32.mrf.mxu0
    %v851 = vadd.f32 0.0, %v850
    %v852 = vpop.f32.mrf.mxu0
    %853 = vmatprep.mubr.bf16.mxu0 %v490
    %854 = vmatmul.mubr.bf16.gmra.mxu0 %v489
    %v855 = vpop.f32.mrf.mxu0
    %v856 = vadd.f32 0.0, %v855
    %v857 = vpop.f32.mrf.mxu0
    %v858 = vpop.f32.mrf.mxu0
    %v859 = vadd.f32 0.0, %v858
    %v860 = vpop.f32.mrf.mxu0
    %861 = vmatprep.mubr.bf16.mxu0 %v492
    %862 = vmatmul.mubr.bf16.gmra.mxu0 %v491
    %v863 = vpop.f32.mrf.mxu0
    %v864 = vadd.f32 0.0, %v863
    %v865 = vpop.f32.mrf.mxu0
    %v866 = vpop.f32.mrf.mxu0
    %v867 = vadd.f32 0.0, %v866
    %v868 = vpop.f32.mrf.mxu0
    %869 = vmatprep.mubr.bf16.mxu0 %v494
    %870 = vmatmul.mubr.bf16.gmra.mxu0 %v493
    %v871 = vpop.f32.mrf.mxu0
    %v872 = vadd.f32 0.0, %v871
    %v873 = vpop.f32.mrf.mxu0
    %v874 = vpop.f32.mrf.mxu0
    %v875 = vadd.f32 0.0, %v874
    %v876 = vpop.f32.mrf.mxu0
    %877 = vmatprep.mubr.bf16.mxu0 %v496
    %878 = vmatmul.mubr.bf16.gmra.mxu0 %v495
    %v879 = vpop.f32.mrf.mxu0
    %v880 = vadd.f32 0.0, %v879
    %v881 = vpop.f32.mrf.mxu0
    %v882 = vpop.f32.mrf.mxu0
    %v883 = vadd.f32 0.0, %v882
    %v884 = vpop.f32.mrf.mxu0
    %885 = vmatprep.mubr.bf16.mxu0 %v498
    %886 = vmatmul.mubr.bf16.gmra.mxu0 %v497
    %v887 = vpop.f32.mrf.mxu0
    %v888 = vadd.f32 0.0, %v887
    %v889 = vpop.f32.mrf.mxu0
    %v890 = vpop.f32.mrf.mxu0
    %v891 = vadd.f32 0.0, %v890
    %v892 = vpop.f32.mrf.mxu0
    %893 = vmatprep.mubr.bf16.mxu0 %v500
    %894 = vmatmul.mubr.bf16.gmra.mxu0 %v499
    %v895 = vpop.f32.mrf.mxu0
    %v896 = vadd.f32 0.0, %v895
    %v897 = vpop.f32.mrf.mxu0
    %v898 = vpop.f32.mrf.mxu0
    %v899 = vadd.f32 0.0, %v898
    %v900 = vpop.f32.mrf.mxu0
    %901 = vmatprep.mubr.bf16.mxu0 %v502
    %902 = vmatmul.mubr.bf16.gmra.mxu0 %v501
    %v903 = vpop.f32.mrf.mxu0
    %v904 = vadd.f32 0.0, %v903
    %v905 = vpop.f32.mrf.mxu0
    %v906 = vpop.f32.mrf.mxu0
    %v907 = vadd.f32 0.0, %v906
    %v908 = vpop.f32.mrf.mxu0
    %909 = vmatprep.mubr.bf16.mxu0 %v504
    %910 = vmatmul.mubr.bf16.gmra.mxu0 %v503
    %v911 = vpop.f32.mrf.mxu0
    %v912 = vadd.f32 0.0, %v911
    %v913 = vpop.f32.mrf.mxu0
    %v914 = vpop.f32.mrf.mxu0
    %v915 = vadd.f32 0.0, %v914
    %v916 = vpop.f32.mrf.mxu0
    %917 = vmatprep.mubr.bf16.mxu0 %v506
    %918 = vmatmul.mubr.bf16.gmra.mxu0 %v505
    %v919 = vpop.f32.mrf.mxu0
    %v920 = vadd.f32 0.0, %v919
    %v921 = vpop.f32.mrf.mxu0
    %v922 = vpop.f32.mrf.mxu0
    %v923 = vadd.f32 0.0, %v922
    %v924 = vpop.f32.mrf.mxu0
    %925 = vmatprep.mubr.bf16.mxu0 %v508
    %926 = vmatmul.mubr.bf16.gmra.mxu0 %v507
    %v927 = vpop.f32.mrf.mxu0
    %v928 = vadd.f32 0.0, %v927
    %v929 = vpop.f32.mrf.mxu0
    %v930 = vpop.f32.mrf.mxu0
    %v931 = vadd.f32 0.0, %v930
    %v932 = vpop.f32.mrf.mxu0
    %933 = vmatprep.mubr.bf16.mxu0 %v510
    %934 = vmatmul.mubr.bf16.gmra.mxu0 %v509
    %v935 = vpop.f32.mrf.mxu0
    %v936 = vadd.f32 0.0, %v935
    %v937 = vpop.f32.mrf.mxu0
    %v938 = vpop.f32.mrf.mxu0
    %v939 = vadd.f32 0.0, %v938
    %v940 = vpop.f32.mrf.mxu0
    %941 = vmatprep.mubr.bf16.mxu0 %v512
    %942 = vmatmul.mubr.bf16.gmra.mxu0 %v511
    %v943 = vpop.f32.mrf.mxu0
    %v944 = vadd.f32 0.0, %v943
    %v945 = vpop.f32.mrf.mxu0
    %v946 = vpop.f32.mrf.mxu0
    %v947 = vadd.f32 0.0, %v946
    %v948 = vpop.f32.mrf.mxu0
    %949 = vmatprep.mubr.bf16.mxu0 %v514
    %950 = vmatmul.mubr.bf16.gmra.mxu0 %v513
    %v951 = vpop.f32.mrf.mxu0
    %v952 = vadd.f32 0.0, %v951
    %v953 = vpop.f32.mrf.mxu0
    %v954 = vpop.f32.mrf.mxu0
    %v955 = vadd.f32 0.0, %v954
    %v956 = vpop.f32.mrf.mxu0
    %957 = vmatprep.mubr.bf16.mxu0 %v516
    %958 = vmatmul.mubr.bf16.gmra.mxu0 %v515
    %v959 = vpop.f32.mrf.mxu0
    %v960 = vadd.f32 0.0, %v959
    %v961 = vpop.f32.mrf.mxu0
    %v962 = vpop.f32.mrf.mxu0
    %v963 = vadd.f32 0.0, %v962
    %v964 = vpop.f32.mrf.mxu0
    %965 = vdwg.mxu0
    %v966 = vadd.f32 %v101, %v712
    %v967 = vadd.f32 %v102, %v715
    %v968 = vadd.f32 %v103, %v720
    %v969 = vadd.f32 %v104, %v723
    %v970 = vadd.f32 %v105, %v728
    %v971 = vadd.f32 %v106, %v731
    %v972 = vadd.f32 %v107, %v736
    %v973 = vadd.f32 %v108, %v739
    %v974 = vadd.f32 %v109, %v744
    %v975 = vadd.f32 %v110, %v747
    %v976 = vadd.f32 %v111, %v752
    %v977 = vadd.f32 %v112, %v755
    %v978 = vadd.f32 %v113, %v760
    %v979 = vadd.f32 %v114, %v763
    %v980 = vadd.f32 %v115, %v768
    %v981 = vadd.f32 %v116, %v771
    %v982 = vadd.f32 %v117, %v776
    %v983 = vadd.f32 %v118, %v779
    %v984 = vadd.f32 %v119, %v784
    %v985 = vadd.f32 %v120, %v787
    %v986 = vadd.f32 %v121, %v792
    %v987 = vadd.f32 %v122, %v795
    %v988 = vadd.f32 %v123, %v800
    %v989 = vadd.f32 %v124, %v803
    %v990 = vadd.f32 %v125, %v808
    %v991 = vadd.f32 %v126, %v811
    %v992 = vadd.f32 %v127, %v816
    %v993 = vadd.f32 %v128, %v819
    %v994 = vadd.f32 %v129, %v824
    %v995 = vadd.f32 %v130, %v827
    %v996 = vadd.f32 %v131, %v832
    %v997 = vadd.f32 %v132, %v835
    %v998 = vadd.f32 %v133, %v840
    %v999 = vadd.f32 %v134, %v843
    %v1000 = vadd.f32 %v135, %v848
    %v1001 = vadd.f32 %v136, %v851
    %v1002 = vadd.f32 %v137, %v856
    %v1003 = vadd.f32 %v138, %v859
    %v1004 = vadd.f32 %v139, %v864
    %v1005 = vadd.f32 %v140, %v867
    %v1006 = vadd.f32 %v141, %v872
    %v1007 = vadd.f32 %v142, %v875
    %v1008 = vadd.f32 %v143, %v880
    %v1009 = vadd.f32 %v144, %v883
    %v1010 = vadd.f32 %v145, %v888
    %v1011 = vadd.f32 %v146, %v891
    %v1012 = vadd.f32 %v147, %v896
    %v1013 = vadd.f32 %v148, %v899
    %v1014 = vadd.f32 %v149, %v904
    %v1015 = vadd.f32 %v150, %v907
    %v1016 = vadd.f32 %v151, %v912
    %v1017 = vadd.f32 %v152, %v915
    %v1018 = vadd.f32 %v153, %v920
    %v1019 = vadd.f32 %v154, %v923
    %v1020 = vadd.f32 %v155, %v928
    %v1021 = vadd.f32 %v156, %v931
    %v1022 = vadd.f32 %v157, %v936
    %v1023 = vadd.f32 %v158, %v939
    %v1024 = vadd.f32 %v159, %v944
    %v1025 = vadd.f32 %v160, %v947
    %v1026 = vadd.f32 %v161, %v952
    %v1027 = vadd.f32 %v162, %v955
    %v1028 = vadd.f32 %v163, %v960
    %v1029 = vadd.f32 %v164, %v963
    %vm1030 = vcmask 523264
    %1031 = vst.msk [vmem:[#allocation2] sm:$0xff] %vm1030, %v966
    %1032 = vst.msk [vmem:[#allocation2 + $0x8] sm:$0xff] %vm1030, %v967
    %1033 = vst.msk [vmem:[#allocation2 + $0x10] sm:$0xff] %vm1030, %v968
    %1034 = vst.msk [vmem:[#allocation2 + $0x18] sm:$0xff] %vm1030, %v969
    %1035 = vst.msk [vmem:[#allocation2 + $0x20] sm:$0xff] %vm1030, %v970
    %1036 = vst.msk [vmem:[#allocation2 + $0x28] sm:$0xff] %vm1030, %v971
    %1037 = vst.msk [vmem:[#allocation2 + $0x30] sm:$0xff] %vm1030, %v972
    %1038 = vst.msk [vmem:[#allocation2 + $0x38] sm:$0xff] %vm1030, %v973
    %1039 = vst.msk [vmem:[#allocation2 + $0x40] sm:$0xff] %vm1030, %v974
    %1040 = vst.msk [vmem:[#allocation2 + $0x48] sm:$0xff] %vm1030, %v975
    %1041 = vst.msk [vmem:[#allocation2 + $0x50] sm:$0xff] %vm1030, %v976
    %1042 = vst.msk [vmem:[#allocation2 + $0x58] sm:$0xff] %vm1030, %v977
    %1043 = vst.msk [vmem:[#allocation2 + $0x60] sm:$0xff] %vm1030, %v978
    %1044 = vst.msk [vmem:[#allocation2 + $0x68] sm:$0xff] %vm1030, %v979
    %1045 = vst.msk [vmem:[#allocation2 + $0x70] sm:$0xff] %vm1030, %v980
    %1046 = vst.msk [vmem:[#allocation2 + $0x78] sm:$0xff] %vm1030, %v981
    %1047 = vst.msk [vmem:[#allocation2 + $0x80] sm:$0xff] %vm1030, %v982
    %1048 = vst.msk [vmem:[#allocation2 + $0x88] sm:$0xff] %vm1030, %v983
    %1049 = vst.msk [vmem:[#allocation2 + $0x90] sm:$0xff] %vm1030, %v984
    %1050 = vst.msk [vmem:[#allocation2 + $0x98] sm:$0xff] %vm1030, %v985
    %1051 = vst.msk [vmem:[#allocation2 + $0xa0] sm:$0xff] %vm1030, %v986
    %1052 = vst.msk [vmem:[#allocation2 + $0xa8] sm:$0xff] %vm1030, %v987
    %1053 = vst.msk [vmem:[#allocation2 + $0xb0] sm:$0xff] %vm1030, %v988
    %1054 = vst.msk [vmem:[#allocation2 + $0xb8] sm:$0xff] %vm1030, %v989
    %1055 = vst.msk [vmem:[#allocation2 + $0xc0] sm:$0xff] %vm1030, %v990
    %1056 = vst.msk [vmem:[#allocation2 + $0xc8] sm:$0xff] %vm1030, %v991
    %1057 = vst.msk [vmem:[#allocation2 + $0xd0] sm:$0xff] %vm1030, %v992
    %1058 = vst.msk [vmem:[#allocation2 + $0xd8] sm:$0xff] %vm1030, %v993
    %1059 = vst.msk [vmem:[#allocation2 + $0xe0] sm:$0xff] %vm1030, %v994
    %1060 = vst.msk [vmem:[#allocation2 + $0xe8] sm:$0xff] %vm1030, %v995
    %1061 = vst.msk [vmem:[#allocation2 + $0xf0] sm:$0xff] %vm1030, %v996
    %1062 = vst.msk [vmem:[#allocation2 + $0xf8] sm:$0xff] %vm1030, %v997
    %1063 = vst.msk [vmem:[#allocation2 + $0x100] sm:$0xff] %vm1030, %v998
    %1064 = vst.msk [vmem:[#allocation2 + $0x108] sm:$0xff] %vm1030, %v999
    %1065 = vst.msk [vmem:[#allocation2 + $0x110] sm:$0xff] %vm1030, %v1000
    %1066 = vst.msk [vmem:[#allocation2 + $0x118] sm:$0xff] %vm1030, %v1001
    %1067 = vst.msk [vmem:[#allocation2 + $0x120] sm:$0xff] %vm1030, %v1002
    %1068 = vst.msk [vmem:[#allocation2 + $0x128] sm:$0xff] %vm1030, %v1003
    %1069 = vst.msk [vmem:[#allocation2 + $0x130] sm:$0xff] %vm1030, %v1004
    %1070 = vst.msk [vmem:[#allocation2 + $0x138] sm:$0xff] %vm1030, %v1005
    %1071 = vst.msk [vmem:[#allocation2 + $0x140] sm:$0xff] %vm1030, %v1006
    %1072 = vst.msk [vmem:[#allocation2 + $0x148] sm:$0xff] %vm1030, %v1007
    %1073 = vst.msk [vmem:[#allocation2 + $0x150] sm:$0xff] %vm1030, %v1008
    %1074 = vst.msk [vmem:[#allocation2 + $0x158] sm:$0xff] %vm1030, %v1009
    %1075 = vst.msk [vmem:[#allocation2 + $0x160] sm:$0xff] %vm1030, %v1010
    %1076 = vst.msk [vmem:[#allocation2 + $0x168] sm:$0xff] %vm1030, %v1011
    %1077 = vst.msk [vmem:[#allocation2 + $0x170] sm:$0xff] %vm1030, %v1012
    %1078 = vst.msk [vmem:[#allocation2 + $0x178] sm:$0xff] %vm1030, %v1013
    %1079 = vst.msk [vmem:[#allocation2 + $0x180] sm:$0xff] %vm1030, %v1014
    %1080 = vst.msk [vmem:[#allocation2 + $0x188] sm:$0xff] %vm1030, %v1015
    %1081 = vst.msk [vmem:[#allocation2 + $0x190] sm:$0xff] %vm1030, %v1016
    %1082 = vst.msk [vmem:[#allocation2 + $0x198] sm:$0xff] %vm1030, %v1017
    %1083 = vst.msk [vmem:[#allocation2 + $0x1a0] sm:$0xff] %vm1030, %v1018
    %1084 = vst.msk [vmem:[#allocation2 + $0x1a8] sm:$0xff] %vm1030, %v1019
    %1085 = vst.msk [vmem:[#allocation2 + $0x1b0] sm:$0xff] %vm1030, %v1020
    %1086 = vst.msk [vmem:[#allocation2 + $0x1b8] sm:$0xff] %vm1030, %v1021
    %1087 = vst.msk [vmem:[#allocation2 + $0x1c0] sm:$0xff] %vm1030, %v1022
    %1088 = vst.msk [vmem:[#allocation2 + $0x1c8] sm:$0xff] %vm1030, %v1023
    %1089 = vst.msk [vmem:[#allocation2 + $0x1d0] sm:$0xff] %vm1030, %v1024
    %1090 = vst.msk [vmem:[#allocation2 + $0x1d8] sm:$0xff] %vm1030, %v1025
    %1091 = vst.msk [vmem:[#allocation2 + $0x1e0] sm:$0xff] %vm1030, %v1026
    %1092 = vst.msk [vmem:[#allocation2 + $0x1e8] sm:$0xff] %vm1030, %v1027
    %1093 = vst.msk [vmem:[#allocation2 + $0x1f0] sm:$0xff] %vm1030, %v1028
    %1094 = vst.msk [vmem:[#allocation2 + $0x1f8] sm:$0xff] %vm1030, %v1029
    // Predicated region
    $region26: #{tpu_custom_call.1} parent=1 // pred_check
      %p1095 = pneg %p32
    $region27: #{tpu_custom_call.1} parent=1 // pred_check_branch
      %1097 = sbr.rel (%p1095) target = $region29
    $region28: #{tpu_custom_call.1} parent=1 // pred_region
      %v1098 = vld [vmem:[#allocation2] sm:$0xff]
      %v1099 = vld [vmem:[#allocation2 + $0x8] sm:$0xff]
      %v1100 = vld [vmem:[#allocation2 + $0x10] sm:$0xff]
      %v1101 = vld [vmem:[#allocation2 + $0x18] sm:$0xff]
      %v1102 = vld [vmem:[#allocation2 + $0x20] sm:$0xff]
      %v1103 = vld [vmem:[#allocation2 + $0x28] sm:$0xff]
      %v1104 = vld [vmem:[#allocation2 + $0x30] sm:$0xff]
      %v1105 = vld [vmem:[#allocation2 + $0x38] sm:$0xff]
      %v1106 = vld [vmem:[#allocation2 + $0x40] sm:$0xff]
      %v1107 = vld [vmem:[#allocation2 + $0x48] sm:$0xff]
      %v1108 = vld [vmem:[#allocation2 + $0x50] sm:$0xff]
      %v1109 = vld [vmem:[#allocation2 + $0x58] sm:$0xff]
      %v1110 = vld [vmem:[#allocation2 + $0x60] sm:$0xff]
      %v1111 = vld [vmem:[#allocation2 + $0x68] sm:$0xff]
      %v1112 = vld [vmem:[#allocation2 + $0x70] sm:$0xff]
      %v1113 = vld [vmem:[#allocation2 + $0x78] sm:$0xff]
      %v1114 = vld [vmem:[#allocation2 + $0x80] sm:$0xff]
      %v1115 = vld [vmem:[#allocation2 + $0x88] sm:$0xff]
      %v1116 = vld [vmem:[#allocation2 + $0x90] sm:$0xff]
      %v1117 = vld [vmem:[#allocation2 + $0x98] sm:$0xff]
      %v1118 = vld [vmem:[#allocation2 + $0xa0] sm:$0xff]
      %v1119 = vld [vmem:[#allocation2 + $0xa8] sm:$0xff]
      %v1120 = vld [vmem:[#allocation2 + $0xb0] sm:$0xff]
      %v1121 = vld [vmem:[#allocation2 + $0xb8] sm:$0xff]
      %v1122 = vld [vmem:[#allocation2 + $0xc0] sm:$0xff]
      %v1123 = vld [vmem:[#allocation2 + $0xc8] sm:$0xff]
      %v1124 = vld [vmem:[#allocation2 + $0xd0] sm:$0xff]
      %v1125 = vld [vmem:[#allocation2 + $0xd8] sm:$0xff]
      %v1126 = vld [vmem:[#allocation2 + $0xe0] sm:$0xff]
      %v1127 = vld [vmem:[#allocation2 + $0xe8] sm:$0xff]
      %v1128 = vld [vmem:[#allocation2 + $0xf0] sm:$0xff]
      %v1129 = vld [vmem:[#allocation2 + $0xf8] sm:$0xff]
      %v1130 = vld [vmem:[#allocation2 + $0x100] sm:$0xff]
      %v1131 = vld [vmem:[#allocation2 + $0x108] sm:$0xff]
      %v1132 = vld [vmem:[#allocation2 + $0x110] sm:$0xff]
      %v1133 = vld [vmem:[#allocation2 + $0x118] sm:$0xff]
      %v1134 = vld [vmem:[#allocation2 + $0x120] sm:$0xff]
      %v1135 = vld [vmem:[#allocation2 + $0x128] sm:$0xff]
      %v1136 = vld [vmem:[#allocation2 + $0x130] sm:$0xff]
      %v1137 = vld [vmem:[#allocation2 + $0x138] sm:$0xff]
      %v1138 = vld [vmem:[#allocation2 + $0x140] sm:$0xff]
      %v1139 = vld [vmem:[#allocation2 + $0x148] sm:$0xff]
      %v1140 = vld [vmem:[#allocation2 + $0x150] sm:$0xff]
      %v1141 = vld [vmem:[#allocation2 + $0x158] sm:$0xff]
      %v1142 = vld [vmem:[#allocation2 + $0x160] sm:$0xff]
      %v1143 = vld [vmem:[#allocation2 + $0x168] sm:$0xff]
      %v1144 = vld [vmem:[#allocation2 + $0x170] sm:$0xff]
      %v1145 = vld [vmem:[#allocation2 + $0x178] sm:$0xff]
      %v1146 = vld [vmem:[#allocation2 + $0x180] sm:$0xff]
      %v1147 = vld [vmem:[#allocation2 + $0x188] sm:$0xff]
      %v1148 = vld [vmem:[#allocation2 + $0x190] sm:$0xff]
      %v1149 = vld [vmem:[#allocation2 + $0x198] sm:$0xff]
      %v1150 = vld [vmem:[#allocation2 + $0x1a0] sm:$0xff]
      %v1151 = vld [vmem:[#allocation2 + $0x1a8] sm:$0xff]
      %v1152 = vld [vmem:[#allocation2 + $0x1b0] sm:$0xff]
      %v1153 = vld [vmem:[#allocation2 + $0x1b8] sm:$0xff]
      %v1154 = vld [vmem:[#allocation2 + $0x1c0] sm:$0xff]
      %v1155 = vld [vmem:[#allocation2 + $0x1c8] sm:$0xff]
      %v1156 = vld [vmem:[#allocation2 + $0x1d0] sm:$0xff]
      %v1157 = vld [vmem:[#allocation2 + $0x1d8] sm:$0xff]
      %v1158 = vld [vmem:[#allocation2 + $0x1e0] sm:$0xff]
      %v1159 = vld [vmem:[#allocation2 + $0x1e8] sm:$0xff]
      %v1160 = vld [vmem:[#allocation2 + $0x1f0] sm:$0xff]
      %v1161 = vld [vmem:[#allocation2 + $0x1f8] sm:$0xff]
      %v1162 = vsel %vm1030, %v1098, 0.0
      %v1163 = vsel %vm1030, %v1099, 0.0
      %v1164 = vadd.f32 %v1162, %v1163
      %v1165 = vsel %vm1030, %v1100, 0.0
      %v1166 = vadd.f32 %v1164, %v1165
      %v1167 = vsel %vm1030, %v1101, 0.0
      %v1168 = vadd.f32 %v1166, %v1167
      %v1169 = vsel %vm1030, %v1102, 0.0
      %v1170 = vadd.f32 %v1168, %v1169
      %v1171 = vsel %vm1030, %v1103, 0.0
      %v1172 = vadd.f32 %v1170, %v1171
      %v1173 = vsel %vm1030, %v1104, 0.0
      %v1174 = vadd.f32 %v1172, %v1173
      %v1175 = vsel %vm1030, %v1105, 0.0
      %v1176 = vadd.f32 %v1174, %v1175
      %v1177 = vsel %vm1030, %v1106, 0.0
      %v1178 = vadd.f32 %v1176, %v1177
      %v1179 = vsel %vm1030, %v1107, 0.0
      %v1180 = vadd.f32 %v1178, %v1179
      %v1181 = vsel %vm1030, %v1108, 0.0
      %v1182 = vadd.f32 %v1180, %v1181
      %v1183 = vsel %vm1030, %v1109, 0.0
      %v1184 = vadd.f32 %v1182, %v1183
      %v1185 = vsel %vm1030, %v1110, 0.0
      %v1186 = vadd.f32 %v1184, %v1185
      %v1187 = vsel %vm1030, %v1111, 0.0
      %v1188 = vadd.f32 %v1186, %v1187
      %v1189 = vsel %vm1030, %v1112, 0.0
      %v1190 = vadd.f32 %v1188, %v1189
      %v1191 = vsel %vm1030, %v1113, 0.0
      %v1192 = vadd.f32 %v1190, %v1191
      %v1193 = vsel %vm1030, %v1114, 0.0
      %v1194 = vadd.f32 %v1192, %v1193
      %v1195 = vsel %vm1030, %v1115, 0.0
      %v1196 = vadd.f32 %v1194, %v1195
      %v1197 = vsel %vm1030, %v1116, 0.0
      %v1198 = vadd.f32 %v1196, %v1197
      %v1199 = vsel %vm1030, %v1117, 0.0
      %v1200 = vadd.f32 %v1198, %v1199
      %v1201 = vsel %vm1030, %v1118, 0.0
      %v1202 = vadd.f32 %v1200, %v1201
      %v1203 = vsel %vm1030, %v1119, 0.0
      %v1204 = vadd.f32 %v1202, %v1203
      %v1205 = vsel %vm1030, %v1120, 0.0
      %v1206 = vadd.f32 %v1204, %v1205
      %v1207 = vsel %vm1030, %v1121, 0.0
      %v1208 = vadd.f32 %v1206, %v1207
      %v1209 = vsel %vm1030, %v1122, 0.0
      %v1210 = vadd.f32 %v1208, %v1209
      %v1211 = vsel %vm1030, %v1123, 0.0
      %v1212 = vadd.f32 %v1210, %v1211
      %v1213 = vsel %vm1030, %v1124, 0.0
      %v1214 = vadd.f32 %v1212, %v1213
      %v1215 = vsel %vm1030, %v1125, 0.0
      %v1216 = vadd.f32 %v1214, %v1215
      %v1217 = vsel %vm1030, %v1126, 0.0
      %v1218 = vadd.f32 %v1216, %v1217
      %v1219 = vsel %vm1030, %v1127, 0.0
      %v1220 = vadd.f32 %v1218, %v1219
      %v1221 = vsel %vm1030, %v1128, 0.0
      %v1222 = vadd.f32 %v1220, %v1221
      %v1223 = vsel %vm1030, %v1129, 0.0
      %v1224 = vadd.f32 %v1222, %v1223
      %v1225 = vsel %vm1030, %v1130, 0.0
      %v1226 = vadd.f32 %v1224, %v1225
      %v1227 = vsel %vm1030, %v1131, 0.0
      %v1228 = vadd.f32 %v1226, %v1227
      %v1229 = vsel %vm1030, %v1132, 0.0
      %v1230 = vadd.f32 %v1228, %v1229
      %v1231 = vsel %vm1030, %v1133, 0.0
      %v1232 = vadd.f32 %v1230, %v1231
      %v1233 = vsel %vm1030, %v1134, 0.0
      %v1234 = vadd.f32 %v1232, %v1233
      %v1235 = vsel %vm1030, %v1135, 0.0
      %v1236 = vadd.f32 %v1234, %v1235
      %v1237 = vsel %vm1030, %v1136, 0.0
      %v1238 = vadd.f32 %v1236, %v1237
      %v1239 = vsel %vm1030, %v1137, 0.0
      %v1240 = vadd.f32 %v1238, %v1239
      %v1241 = vsel %vm1030, %v1138, 0.0
      %v1242 = vadd.f32 %v1240, %v1241
      %v1243 = vsel %vm1030, %v1139, 0.0
      %v1244 = vadd.f32 %v1242, %v1243
      %v1245 = vsel %vm1030, %v1140, 0.0
      %v1246 = vadd.f32 %v1244, %v1245
      %v1247 = vsel %vm1030, %v1141, 0.0
      %v1248 = vadd.f32 %v1246, %v1247
      %v1249 = vsel %vm1030, %v1142, 0.0
      %v1250 = vadd.f32 %v1248, %v1249
      %v1251 = vsel %vm1030, %v1143, 0.0
      %v1252 = vadd.f32 %v1250, %v1251
      %v1253 = vsel %vm1030, %v1144, 0.0
      %v1254 = vadd.f32 %v1252, %v1253
      %v1255 = vsel %vm1030, %v1145, 0.0
      %v1256 = vadd.f32 %v1254, %v1255
      %v1257 = vsel %vm1030, %v1146, 0.0
      %v1258 = vadd.f32 %v1256, %v1257
      %v1259 = vsel %vm1030, %v1147, 0.0
      %v1260 = vadd.f32 %v1258, %v1259
      %v1261 = vsel %vm1030, %v1148, 0.0
      %v1262 = vadd.f32 %v1260, %v1261
      %v1263 = vsel %vm1030, %v1149, 0.0
      %v1264 = vadd.f32 %v1262, %v1263
      %v1265 = vsel %vm1030, %v1150, 0.0
      %v1266 = vadd.f32 %v1264, %v1265
      %v1267 = vsel %vm1030, %v1151, 0.0
      %v1268 = vadd.f32 %v1266, %v1267
      %v1269 = vsel %vm1030, %v1152, 0.0
      %v1270 = vadd.f32 %v1268, %v1269
      %v1271 = vsel %vm1030, %v1153, 0.0
      %v1272 = vadd.f32 %v1270, %v1271
      %v1273 = vsel %vm1030, %v1154, 0.0
      %v1274 = vadd.f32 %v1272, %v1273
      %v1275 = vsel %vm1030, %v1155, 0.0
      %v1276 = vadd.f32 %v1274, %v1275
      %v1277 = vsel %vm1030, %v1156, 0.0
      %v1278 = vadd.f32 %v1276, %v1277
      %v1279 = vsel %vm1030, %v1157, 0.0
      %v1280 = vadd.f32 %v1278, %v1279
      %v1281 = vsel %vm1030, %v1158, 0.0
      %v1282 = vadd.f32 %v1280, %v1281
      %v1283 = vsel %vm1030, %v1159, 0.0
      %v1284 = vadd.f32 %v1282, %v1283
      %v1285 = vsel %vm1030, %v1160, 0.0
      %v1286 = vadd.f32 %v1284, %v1285
      %v1287 = vsel %vm1030, %v1161, 0.0
      %v1288 = vadd.f32 %v1286, %v1287
      %v1289 = vrot.slane %v1288, 4
      %v1290 = vadd.f32 %v1288, %v1289
      %v1291 = vrot.slane %v1290, 2
      %v1292 = vadd.f32 %v1290, %v1291
      %v1293 = vrot.slane %v1292, 1
      %v1294 = vadd.f32 %v1292, %v1293
      %v1295 = vmul.f32 %v1294, 0.001953125
      %v1296 = vmul.f32 %v1098, %v1098
      %v1297 = vmul.f32 %v1099, %v1099
      %v1298 = vmul.f32 %v1100, %v1100
      %v1299 = vmul.f32 %v1101, %v1101
      %v1300 = vmul.f32 %v1102, %v1102
      %v1301 = vmul.f32 %v1103, %v1103
      %v1302 = vmul.f32 %v1104, %v1104
      %v1303 = vmul.f32 %v1105, %v1105
      %v1304 = vmul.f32 %v1106, %v1106
      %v1305 = vmul.f32 %v1107, %v1107
      %v1306 = vmul.f32 %v1108, %v1108
      %v1307 = vmul.f32 %v1109, %v1109
      %v1308 = vmul.f32 %v1110, %v1110
      %v1309 = vmul.f32 %v1111, %v1111
      %v1310 = vmul.f32 %v1112, %v1112
      %v1311 = vmul.f32 %v1113, %v1113
      %v1312 = vmul.f32 %v1114, %v1114
      %v1313 = vmul.f32 %v1115, %v1115
      %v1314 = vmul.f32 %v1116, %v1116
      %v1315 = vmul.f32 %v1117, %v1117
      %v1316 = vmul.f32 %v1118, %v1118
      %v1317 = vmul.f32 %v1119, %v1119
      %v1318 = vmul.f32 %v1120, %v1120
      %v1319 = vmul.f32 %v1121, %v1121
      %v1320 = vmul.f32 %v1122, %v1122
      %v1321 = vmul.f32 %v1123, %v1123
      %v1322 = vmul.f32 %v1124, %v1124
      %v1323 = vmul.f32 %v1125, %v1125
      %v1324 = vmul.f32 %v1126, %v1126
      %v1325 = vmul.f32 %v1127, %v1127
      %v1326 = vmul.f32 %v1128, %v1128
      %v1327 = vmul.f32 %v1129, %v1129
      %v1328 = vmul.f32 %v1130, %v1130
      %v1329 = vmul.f32 %v1131, %v1131
      %v1330 = vmul.f32 %v1132, %v1132
      %v1331 = vmul.f32 %v1133, %v1133
      %v1332 = vmul.f32 %v1134, %v1134
      %v1333 = vmul.f32 %v1135, %v1135
      %v1334 = vmul.f32 %v1136, %v1136
      %v1335 = vmul.f32 %v1137, %v1137
      %v1336 = vmul.f32 %v1138, %v1138
      %v1337 = vmul.f32 %v1139, %v1139
      %v1338 = vmul.f32 %v1140, %v1140
      %v1339 = vmul.f32 %v1141, %v1141
      %v1340 = vmul.f32 %v1142, %v1142
      %v1341 = vmul.f32 %v1143, %v1143
      %v1342 = vmul.f32 %v1144, %v1144
      %v1343 = vmul.f32 %v1145, %v1145
      %v1344 = vmul.f32 %v1146, %v1146
      %v1345 = vmul.f32 %v1147, %v1147
      %v1346 = vmul.f32 %v1148, %v1148
      %v1347 = vmul.f32 %v1149, %v1149
      %v1348 = vmul.f32 %v1150, %v1150
      %v1349 = vmul.f32 %v1151, %v1151
      %v1350 = vmul.f32 %v1152, %v1152
      %v1351 = vmul.f32 %v1153, %v1153
      %v1352 = vmul.f32 %v1154, %v1154
      %v1353 = vmul.f32 %v1155, %v1155
      %v1354 = vmul.f32 %v1156, %v1156
      %v1355 = vmul.f32 %v1157, %v1157
      %v1356 = vmul.f32 %v1158, %v1158
      %v1357 = vmul.f32 %v1159, %v1159
      %v1358 = vmul.f32 %v1160, %v1160
      %v1359 = vmul.f32 %v1161, %v1161
      %v1360 = vsel %vm1030, %v1296, 0.0
      %v1361 = vsel %vm1030, %v1297, 0.0
      %v1362 = vadd.f32 %v1360, %v1361
      %v1363 = vsel %vm1030, %v1298, 0.0
      %v1364 = vadd.f32 %v1362, %v1363
      %v1365 = vsel %vm1030, %v1299, 0.0
      %v1366 = vadd.f32 %v1364, %v1365
      %v1367 = vsel %vm1030, %v1300, 0.0
      %v1368 = vadd.f32 %v1366, %v1367
      %v1369 = vsel %vm1030, %v1301, 0.0
      %v1370 = vadd.f32 %v1368, %v1369
      %v1371 = vsel %vm1030, %v1302, 0.0
      %v1372 = vadd.f32 %v1370, %v1371
      %v1373 = vsel %vm1030, %v1303, 0.0
      %v1374 = vadd.f32 %v1372, %v1373
      %v1375 = vsel %vm1030, %v1304, 0.0
      %v1376 = vadd.f32 %v1374, %v1375
      %v1377 = vsel %vm1030, %v1305, 0.0
      %v1378 = vadd.f32 %v1376, %v1377
      %v1379 = vsel %vm1030, %v1306, 0.0
      %v1380 = vadd.f32 %v1378, %v1379
      %v1381 = vsel %vm1030, %v1307, 0.0
      %v1382 = vadd.f32 %v1380, %v1381
      %v1383 = vsel %vm1030, %v1308, 0.0
      %v1384 = vadd.f32 %v1382, %v1383
      %v1385 = vsel %vm1030, %v1309, 0.0
      %v1386 = vadd.f32 %v1384, %v1385
      %v1387 = vsel %vm1030, %v1310, 0.0
      %v1388 = vadd.f32 %v1386, %v1387
      %v1389 = vsel %vm1030, %v1311, 0.0
      %v1390 = vadd.f32 %v1388, %v1389
      %v1391 = vsel %vm1030, %v1312, 0.0
      %v1392 = vadd.f32 %v1390, %v1391
      %v1393 = vsel %vm1030, %v1313, 0.0
      %v1394 = vadd.f32 %v1392, %v1393
      %v1395 = vsel %vm1030, %v1314, 0.0
      %v1396 = vadd.f32 %v1394, %v1395
      %v1397 = vsel %vm1030, %v1315, 0.0
      %v1398 = vadd.f32 %v1396, %v1397
      %v1399 = vsel %vm1030, %v1316, 0.0
      %v1400 = vadd.f32 %v1398, %v1399
      %v1401 = vsel %vm1030, %v1317, 0.0
      %v1402 = vadd.f32 %v1400, %v1401
      %v1403 = vsel %vm1030, %v1318, 0.0
      %v1404 = vadd.f32 %v1402, %v1403
      %v1405 = vsel %vm1030, %v1319, 0.0
      %v1406 = vadd.f32 %v1404, %v1405
      %v1407 = vsel %vm1030, %v1320, 0.0
      %v1408 = vadd.f32 %v1406, %v1407
      %v1409 = vsel %vm1030, %v1321, 0.0
      %v1410 = vadd.f32 %v1408, %v1409
      %v1411 = vsel %vm1030, %v1322, 0.0
      %v1412 = vadd.f32 %v1410, %v1411
      %v1413 = vsel %vm1030, %v1323, 0.0
      %v1414 = vadd.f32 %v1412, %v1413
      %v1415 = vsel %vm1030, %v1324, 0.0
      %v1416 = vadd.f32 %v1414, %v1415
      %v1417 = vsel %vm1030, %v1325, 0.0
      %v1418 = vadd.f32 %v1416, %v1417
      %v1419 = vsel %vm1030, %v1326, 0.0
      %v1420 = vadd.f32 %v1418, %v1419
      %v1421 = vsel %vm1030, %v1327, 0.0
      %v1422 = vadd.f32 %v1420, %v1421
      %v1423 = vsel %vm1030, %v1328, 0.0
      %v1424 = vadd.f32 %v1422, %v1423
      %v1425 = vsel %vm1030, %v1329, 0.0
      %v1426 = vadd.f32 %v1424, %v1425
      %v1427 = vsel %vm1030, %v1330, 0.0
      %v1428 = vadd.f32 %v1426, %v1427
      %v1429 = vsel %vm1030, %v1331, 0.0
      %v1430 = vadd.f32 %v1428, %v1429
      %v1431 = vsel %vm1030, %v1332, 0.0
      %v1432 = vadd.f32 %v1430, %v1431
      %v1433 = vsel %vm1030, %v1333, 0.0
      %v1434 = vadd.f32 %v1432, %v1433
      %v1435 = vsel %vm1030, %v1334, 0.0
      %v1436 = vadd.f32 %v1434, %v1435
      %v1437 = vsel %vm1030, %v1335, 0.0
      %v1438 = vadd.f32 %v1436, %v1437
      %v1439 = vsel %vm1030, %v1336, 0.0
      %v1440 = vadd.f32 %v1438, %v1439
      %v1441 = vsel %vm1030, %v1337, 0.0
      %v1442 = vadd.f32 %v1440, %v1441
      %v1443 = vsel %vm1030, %v1338, 0.0
      %v1444 = vadd.f32 %v1442, %v1443
      %v1445 = vsel %vm1030, %v1339, 0.0
      %v1446 = vadd.f32 %v1444, %v1445
      %v1447 = vsel %vm1030, %v1340, 0.0
      %v1448 = vadd.f32 %v1446, %v1447
      %v1449 = vsel %vm1030, %v1341, 0.0
      %v1450 = vadd.f32 %v1448, %v1449
      %v1451 = vsel %vm1030, %v1342, 0.0
      %v1452 = vadd.f32 %v1450, %v1451
      %v1453 = vsel %vm1030, %v1343, 0.0
      %v1454 = vadd.f32 %v1452, %v1453
      %v1455 = vsel %vm1030, %v1344, 0.0
      %v1456 = vadd.f32 %v1454, %v1455
      %v1457 = vsel %vm1030, %v1345, 0.0
      %v1458 = vadd.f32 %v1456, %v1457
      %v1459 = vsel %vm1030, %v1346, 0.0
      %v1460 = vadd.f32 %v1458, %v1459
      %v1461 = vsel %vm1030, %v1347, 0.0
      %v1462 = vadd.f32 %v1460, %v1461
      %v1463 = vsel %vm1030, %v1348, 0.0
      %v1464 = vadd.f32 %v1462, %v1463
      %v1465 = vsel %vm1030, %v1349, 0.0
      %v1466 = vadd.f32 %v1464, %v1465
      %v1467 = vsel %vm1030, %v1350, 0.0
      %v1468 = vadd.f32 %v1466, %v1467
      %v1469 = vsel %vm1030, %v1351, 0.0
      %v1470 = vadd.f32 %v1468, %v1469
      %v1471 = vsel %vm1030, %v1352, 0.0
      %v1472 = vadd.f32 %v1470, %v1471
      %v1473 = vsel %vm1030, %v1353, 0.0
      %v1474 = vadd.f32 %v1472, %v1473
      %v1475 = vsel %vm1030, %v1354, 0.0
      %v1476 = vadd.f32 %v1474, %v1475
      %v1477 = vsel %vm1030, %v1355, 0.0
      %v1478 = vadd.f32 %v1476, %v1477
      %v1479 = vsel %vm1030, %v1356, 0.0
      %v1480 = vadd.f32 %v1478, %v1479
      %v1481 = vsel %vm1030, %v1357, 0.0
      %v1482 = vadd.f32 %v1480, %v1481
      %v1483 = vsel %vm1030, %v1358, 0.0
      %v1484 = vadd.f32 %v1482, %v1483
      %v1485 = vsel %vm1030, %v1359, 0.0
      %v1486 = vadd.f32 %v1484, %v1485
      %v1487 = vrot.slane %v1486, 4
      %v1488 = vadd.f32 %v1486, %v1487
      %v1489 = vrot.slane %v1488, 2
      %v1490 = vadd.f32 %v1488, %v1489
      %v1491 = vrot.slane %v1490, 1
      %v1492 = vadd.f32 %v1490, %v1491
      %v1493 = vmul.f32 %v1492, 0.001953125
      %v1494 = vmul.f32 %v1295, %v1295
      %v1495 = vsub.f32 %v1493, %v1494
      %v1496 = vmax.f32 %v1495, 0.0
      %v1497 = vld [vmem:[%s2] sm:$0x1]
      %v1498 = vadd.f32 %v1496, 1e-05
      %v1499 = vrsqrt.pop %v1498
      %v1500 = vmul.f32 %v1497, %v1499
      %v1501 = vld [vmem:[%s3] sm:$0x1]
      %v1502 = vmul.f32 %v1295, %v1500
      %v1503 = vsub.f32 %v1501, %v1502
      %v1505 = vlaneseq
      %v1506 = vshrl.u32 %v1505, 7
      %v1507 = vsub.s32 0, %v1506
      %v1508 = vrot.slane %v1500, %v1507
      %v1510 = vmul.f32 %v1098, %v1508
      %v1511 = vmul.f32 %v1099, %v1508
      %v1512 = vmul.f32 %v1100, %v1508
      %v1513 = vmul.f32 %v1101, %v1508
      %v1514 = vmul.f32 %v1102, %v1508
      %v1515 = vmul.f32 %v1103, %v1508
      %v1516 = vmul.f32 %v1104, %v1508
      %v1517 = vmul.f32 %v1105, %v1508
      %v1518 = vmul.f32 %v1106, %v1508
      %v1519 = vmul.f32 %v1107, %v1508
      %v1520 = vmul.f32 %v1108, %v1508
      %v1521 = vmul.f32 %v1109, %v1508
      %v1522 = vmul.f32 %v1110, %v1508
      %v1523 = vmul.f32 %v1111, %v1508
      %v1524 = vmul.f32 %v1112, %v1508
      %v1525 = vmul.f32 %v1113, %v1508
      %v1526 = vmul.f32 %v1114, %v1508
      %v1527 = vmul.f32 %v1115, %v1508
      %v1528 = vmul.f32 %v1116, %v1508
      %v1529 = vmul.f32 %v1117, %v1508
      %v1530 = vmul.f32 %v1118, %v1508
      %v1531 = vmul.f32 %v1119, %v1508
      %v1532 = vmul.f32 %v1120, %v1508
      %v1533 = vmul.f32 %v1121, %v1508
      %v1534 = vmul.f32 %v1122, %v1508
      %v1535 = vmul.f32 %v1123, %v1508
      %v1536 = vmul.f32 %v1124, %v1508
      %v1537 = vmul.f32 %v1125, %v1508
      %v1538 = vmul.f32 %v1126, %v1508
      %v1539 = vmul.f32 %v1127, %v1508
      %v1540 = vmul.f32 %v1128, %v1508
      %v1541 = vmul.f32 %v1129, %v1508
      %v1542 = vmul.f32 %v1130, %v1508
      %v1543 = vmul.f32 %v1131, %v1508
      %v1544 = vmul.f32 %v1132, %v1508
      %v1545 = vmul.f32 %v1133, %v1508
      %v1546 = vmul.f32 %v1134, %v1508
      %v1547 = vmul.f32 %v1135, %v1508
      %v1548 = vmul.f32 %v1136, %v1508
      %v1549 = vmul.f32 %v1137, %v1508
      %v1550 = vmul.f32 %v1138, %v1508
      %v1551 = vmul.f32 %v1139, %v1508
      %v1552 = vmul.f32 %v1140, %v1508
      %v1553 = vmul.f32 %v1141, %v1508
      %v1554 = vmul.f32 %v1142, %v1508
      %v1555 = vmul.f32 %v1143, %v1508
      %v1556 = vmul.f32 %v1144, %v1508
      %v1557 = vmul.f32 %v1145, %v1508
      %v1558 = vmul.f32 %v1146, %v1508
      %v1559 = vmul.f32 %v1147, %v1508
      %v1560 = vmul.f32 %v1148, %v1508
      %v1561 = vmul.f32 %v1149, %v1508
      %v1562 = vmul.f32 %v1150, %v1508
      %v1563 = vmul.f32 %v1151, %v1508
      %v1564 = vmul.f32 %v1152, %v1508
      %v1565 = vmul.f32 %v1153, %v1508
      %v1566 = vmul.f32 %v1154, %v1508
      %v1567 = vmul.f32 %v1155, %v1508
      %v1568 = vmul.f32 %v1156, %v1508
      %v1569 = vmul.f32 %v1157, %v1508
      %v1570 = vmul.f32 %v1158, %v1508
      %v1571 = vmul.f32 %v1159, %v1508
      %v1572 = vmul.f32 %v1160, %v1508
      %v1573 = vmul.f32 %v1161, %v1508
      %v1575 = vlaneseq
      %v1576 = vshrl.u32 %v1575, 7
      %v1577 = vsub.s32 0, %v1576
      %v1578 = vrot.slane %v1503, %v1577
      %v1580 = vadd.f32 %v1510, %v1578
      %v1581 = vadd.f32 %v1511, %v1578
      %v1582 = vadd.f32 %v1512, %v1578
      %v1583 = vadd.f32 %v1513, %v1578
      %v1584 = vadd.f32 %v1514, %v1578
      %v1585 = vadd.f32 %v1515, %v1578
      %v1586 = vadd.f32 %v1516, %v1578
      %v1587 = vadd.f32 %v1517, %v1578
      %v1588 = vadd.f32 %v1518, %v1578
      %v1589 = vadd.f32 %v1519, %v1578
      %v1590 = vadd.f32 %v1520, %v1578
      %v1591 = vadd.f32 %v1521, %v1578
      %v1592 = vadd.f32 %v1522, %v1578
      %v1593 = vadd.f32 %v1523, %v1578
      %v1594 = vadd.f32 %v1524, %v1578
      %v1595 = vadd.f32 %v1525, %v1578
      %v1596 = vadd.f32 %v1526, %v1578
      %v1597 = vadd.f32 %v1527, %v1578
      %v1598 = vadd.f32 %v1528, %v1578
      %v1599 = vadd.f32 %v1529, %v1578
      %v1600 = vadd.f32 %v1530, %v1578
      %v1601 = vadd.f32 %v1531, %v1578
      %v1602 = vadd.f32 %v1532, %v1578
      %v1603 = vadd.f32 %v1533, %v1578
      %v1604 = vadd.f32 %v1534, %v1578
      %v1605 = vadd.f32 %v1535, %v1578
      %v1606 = vadd.f32 %v1536, %v1578
      %v1607 = vadd.f32 %v1537, %v1578
      %v1608 = vadd.f32 %v1538, %v1578
      %v1609 = vadd.f32 %v1539, %v1578
      %v1610 = vadd.f32 %v1540, %v1578
      %v1611 = vadd.f32 %v1541, %v1578
      %v1612 = vadd.f32 %v1542, %v1578
      %v1613 = vadd.f32 %v1543, %v1578
      %v1614 = vadd.f32 %v1544, %v1578
      %v1615 = vadd.f32 %v1545, %v1578
      %v1616 = vadd.f32 %v1546, %v1578
      %v1617 = vadd.f32 %v1547, %v1578
      %v1618 = vadd.f32 %v1548, %v1578
      %v1619 = vadd.f32 %v1549, %v1578
      %v1620 = vadd.f32 %v1550, %v1578
      %v1621 = vadd.f32 %v1551, %v1578
      %v1622 = vadd.f32 %v1552, %v1578
      %v1623 = vadd.f32 %v1553, %v1578
      %v1624 = vadd.f32 %v1554, %v1578
      %v1625 = vadd.f32 %v1555, %v1578
      %v1626 = vadd.f32 %v1556, %v1578
      %v1627 = vadd.f32 %v1557, %v1578
      %v1628 = vadd.f32 %v1558, %v1578
      %v1629 = vadd.f32 %v1559, %v1578
      %v1630 = vadd.f32 %v1560, %v1578
      %v1631 = vadd.f32 %v1561, %v1578
      %v1632 = vadd.f32 %v1562, %v1578
      %v1633 = vadd.f32 %v1563, %v1578
      %v1634 = vadd.f32 %v1564, %v1578
      %v1635 = vadd.f32 %v1565, %v1578
      %v1636 = vadd.f32 %v1566, %v1578
      %v1637 = vadd.f32 %v1567, %v1578
      %v1638 = vadd.f32 %v1568, %v1578
      %v1639 = vadd.f32 %v1569, %v1578
      %v1640 = vadd.f32 %v1570, %v1578
      %v1641 = vadd.f32 %v1571, %v1578
      %v1642 = vadd.f32 %v1572, %v1578
      %v1643 = vadd.f32 %v1573, %v1578
      %v1644 = vmax.f32 %v1580, 0.0
      %v1645 = vmax.f32 %v1581, 0.0
      %v1646 = vmax.f32 %v1582, 0.0
      %v1647 = vmax.f32 %v1583, 0.0
      %v1648 = vmax.f32 %v1584, 0.0
      %v1649 = vmax.f32 %v1585, 0.0
      %v1650 = vmax.f32 %v1586, 0.0
      %v1651 = vmax.f32 %v1587, 0.0
      %v1652 = vmax.f32 %v1588, 0.0
      %v1653 = vmax.f32 %v1589, 0.0
      %v1654 = vmax.f32 %v1590, 0.0
      %v1655 = vmax.f32 %v1591, 0.0
      %v1656 = vmax.f32 %v1592, 0.0
      %v1657 = vmax.f32 %v1593, 0.0
      %v1658 = vmax.f32 %v1594, 0.0
      %v1659 = vmax.f32 %v1595, 0.0
      %v1660 = vmax.f32 %v1596, 0.0
      %v1661 = vmax.f32 %v1597, 0.0
      %v1662 = vmax.f32 %v1598, 0.0
      %v1663 = vmax.f32 %v1599, 0.0
      %v1664 = vmax.f32 %v1600, 0.0
      %v1665 = vmax.f32 %v1601, 0.0
      %v1666 = vmax.f32 %v1602, 0.0
      %v1667 = vmax.f32 %v1603, 0.0
      %v1668 = vmax.f32 %v1604, 0.0
      %v1669 = vmax.f32 %v1605, 0.0
      %v1670 = vmax.f32 %v1606, 0.0
      %v1671 = vmax.f32 %v1607, 0.0
      %v1672 = vmax.f32 %v1608, 0.0
      %v1673 = vmax.f32 %v1609, 0.0
      %v1674 = vmax.f32 %v1610, 0.0
      %v1675 = vmax.f32 %v1611, 0.0
      %v1676 = vmax.f32 %v1612, 0.0
      %v1677 = vmax.f32 %v1613, 0.0
      %v1678 = vmax.f32 %v1614, 0.0
      %v1679 = vmax.f32 %v1615, 0.0
      %v1680 = vmax.f32 %v1616, 0.0
      %v1681 = vmax.f32 %v1617, 0.0
      %v1682 = vmax.f32 %v1618, 0.0
      %v1683 = vmax.f32 %v1619, 0.0
      %v1684 = vmax.f32 %v1620, 0.0
      %v1685 = vmax.f32 %v1621, 0.0
      %v1686 = vmax.f32 %v1622, 0.0
      %v1687 = vmax.f32 %v1623, 0.0
      %v1688 = vmax.f32 %v1624, 0.0
      %v1689 = vmax.f32 %v1625, 0.0
      %v1690 = vmax.f32 %v1626, 0.0
      %v1691 = vmax.f32 %v1627, 0.0
      %v1692 = vmax.f32 %v1628, 0.0
      %v1693 = vmax.f32 %v1629, 0.0
      %v1694 = vmax.f32 %v1630, 0.0
      %v1695 = vmax.f32 %v1631, 0.0
      %v1696 = vmax.f32 %v1632, 0.0
      %v1697 = vmax.f32 %v1633, 0.0
      %v1698 = vmax.f32 %v1634, 0.0
      %v1699 = vmax.f32 %v1635, 0.0
      %v1700 = vmax.f32 %v1636, 0.0
      %v1701 = vmax.f32 %v1637, 0.0
      %v1702 = vmax.f32 %v1638, 0.0
      %v1703 = vmax.f32 %v1639, 0.0
      %v1704 = vmax.f32 %v1640, 0.0
      %v1705 = vmax.f32 %v1641, 0.0
      %v1706 = vmax.f32 %v1642, 0.0
      %v1707 = vmax.f32 %v1643, 0.0
      %v1708 = vpack.c.bf16 %v1645, %v1644
      %v1709 = vpack.c.bf16 %v1647, %v1646
      %v1710 = vpack.c.bf16 %v1649, %v1648
      %v1711 = vpack.c.bf16 %v1651, %v1650
      %v1712 = vpack.c.bf16 %v1653, %v1652
      %v1713 = vpack.c.bf16 %v1655, %v1654
      %v1714 = vpack.c.bf16 %v1657, %v1656
      %v1715 = vpack.c.bf16 %v1659, %v1658
      %v1716 = vpack.c.bf16 %v1661, %v1660
      %v1717 = vpack.c.bf16 %v1663, %v1662
      %v1718 = vpack.c.bf16 %v1665, %v1664
      %v1719 = vpack.c.bf16 %v1667, %v1666
      %v1720 = vpack.c.bf16 %v1669, %v1668
      %v1721 = vpack.c.bf16 %v1671, %v1670
      %v1722 = vpack.c.bf16 %v1673, %v1672
      %v1723 = vpack.c.bf16 %v1675, %v1674
      %v1724 = vpack.c.bf16 %v1677, %v1676
      %v1725 = vpack.c.bf16 %v1679, %v1678
      %v1726 = vpack.c.bf16 %v1681, %v1680
      %v1727 = vpack.c.bf16 %v1683, %v1682
      %v1728 = vpack.c.bf16 %v1685, %v1684
      %v1729 = vpack.c.bf16 %v1687, %v1686
      %v1730 = vpack.c.bf16 %v1689, %v1688
      %v1731 = vpack.c.bf16 %v1691, %v1690
      %v1732 = vpack.c.bf16 %v1693, %v1692
      %v1733 = vpack.c.bf16 %v1695, %v1694
      %v1734 = vpack.c.bf16 %v1697, %v1696
      %v1735 = vpack.c.bf16 %v1699, %v1698
      %v1736 = vpack.c.bf16 %v1701, %v1700
      %v1737 = vpack.c.bf16 %v1703, %v1702
      %v1738 = vpack.c.bf16 %v1705, %v1704
      %v1739 = vpack.c.bf16 %v1707, %v1706
      %v1772 = vunpack.c.l.b16 %v1708
      %v1773 = vunpack.c.h.b16 %v1708
      %v1774 = vunpack.c.l.b16 %v1709
      %v1775 = vunpack.c.h.b16 %v1709
      %v1776 = vunpack.c.l.b16 %v1710
      %v1777 = vunpack.c.h.b16 %v1710
      %v1778 = vunpack.c.l.b16 %v1711
      %v1779 = vunpack.c.h.b16 %v1711
      %v1780 = vunpack.c.l.b16 %v1712
      %v1781 = vunpack.c.h.b16 %v1712
      %v1782 = vunpack.c.l.b16 %v1713
      %v1783 = vunpack.c.h.b16 %v1713
      %v1784 = vunpack.c.l.b16 %v1714
      %v1785 = vunpack.c.h.b16 %v1714
      %v1786 = vunpack.c.l.b16 %v1715
      %v1787 = vunpack.c.h.b16 %v1715
      %v1788 = vunpack.c.l.b16 %v1716
      %v1789 = vunpack.c.h.b16 %v1716
      %v1790 = vunpack.c.l.b16 %v1717
      %v1791 = vunpack.c.h.b16 %v1717
      %v1792 = vunpack.c.l.b16 %v1718
      %v1793 = vunpack.c.h.b16 %v1718
      %v1794 = vunpack.c.l.b16 %v1719
      %v1795 = vunpack.c.h.b16 %v1719
      %v1796 = vunpack.c.l.b16 %v1720
      %v1797 = vunpack.c.h.b16 %v1720
      %v1798 = vunpack.c.l.b16 %v1721
      %v1799 = vunpack.c.h.b16 %v1721
      %v1800 = vunpack.c.l.b16 %v1722
      %v1801 = vunpack.c.h.b16 %v1722
      %v1802 = vunpack.c.l.b16 %v1723
      %v1803 = vunpack.c.h.b16 %v1723
      %v1804 = vunpack.c.l.b16 %v1724
      %v1805 = vunpack.c.h.b16 %v1724
      %v1806 = vunpack.c.l.b16 %v1725
      %v1807 = vunpack.c.h.b16 %v1725
      %v1808 = vunpack.c.l.b16 %v1726
      %v1809 = vunpack.c.h.b16 %v1726
      %v1810 = vunpack.c.l.b16 %v1727
      %v1811 = vunpack.c.h.b16 %v1727
      %v1812 = vunpack.c.l.b16 %v1728
      %v1813 = vunpack.c.h.b16 %v1728
      %v1814 = vunpack.c.l.b16 %v1729
      %v1815 = vunpack.c.h.b16 %v1729
      %v1816 = vunpack.c.l.b16 %v1730
      %v1817 = vunpack.c.h.b16 %v1730
      %v1818 = vunpack.c.l.b16 %v1731
      %v1819 = vunpack.c.h.b16 %v1731
      %v1820 = vunpack.c.l.b16 %v1732
      %v1821 = vunpack.c.h.b16 %v1732
      %v1822 = vunpack.c.l.b16 %v1733
      %v1823 = vunpack.c.h.b16 %v1733
      %v1824 = vunpack.c.l.b16 %v1734
      %v1825 = vunpack.c.h.b16 %v1734
      %v1826 = vunpack.c.l.b16 %v1735
      %v1827 = vunpack.c.h.b16 %v1735
      %v1828 = vunpack.c.l.b16 %v1736
      %v1829 = vunpack.c.h.b16 %v1736
      %v1830 = vunpack.c.l.b16 %v1737
      %v1831 = vunpack.c.h.b16 %v1737
      %v1832 = vunpack.c.l.b16 %v1738
      %v1833 = vunpack.c.h.b16 %v1738
      %v1834 = vunpack.c.l.b16 %v1739
      %v1835 = vunpack.c.h.b16 %v1739
      %v1836 = vpack.c.b16 %v1772, %v1772
      %v1837 = vpack.c.b16 %v1773, %v1773
      %v1838 = vpack.c.b16 %v1774, %v1774
      %v1839 = vpack.c.b16 %v1775, %v1775
      %v1840 = vpack.c.b16 %v1776, %v1776
      %v1841 = vpack.c.b16 %v1777, %v1777
      %v1842 = vpack.c.b16 %v1778, %v1778
      %v1843 = vpack.c.b16 %v1779, %v1779
      %v1844 = vpack.c.b16 %v1780, %v1780
      %v1845 = vpack.c.b16 %v1781, %v1781
      %v1846 = vpack.c.b16 %v1782, %v1782
      %v1847 = vpack.c.b16 %v1783, %v1783
      %v1848 = vpack.c.b16 %v1784, %v1784
      %v1849 = vpack.c.b16 %v1785, %v1785
      %v1850 = vpack.c.b16 %v1786, %v1786
      %v1851 = vpack.c.b16 %v1787, %v1787
      %v1852 = vpack.c.b16 %v1788, %v1788
      %v1853 = vpack.c.b16 %v1789, %v1789
      %v1854 = vpack.c.b16 %v1790, %v1790
      %v1855 = vpack.c.b16 %v1791, %v1791
      %v1856 = vpack.c.b16 %v1792, %v1792
      %v1857 = vpack.c.b16 %v1793, %v1793
      %v1858 = vpack.c.b16 %v1794, %v1794
      %v1859 = vpack.c.b16 %v1795, %v1795
      %v1860 = vpack.c.b16 %v1796, %v1796
      %v1861 = vpack.c.b16 %v1797, %v1797
      %v1862 = vpack.c.b16 %v1798, %v1798
      %v1863 = vpack.c.b16 %v1799, %v1799
      %v1864 = vpack.c.b16 %v1800, %v1800
      %v1865 = vpack.c.b16 %v1801, %v1801
      %v1866 = vpack.c.b16 %v1802, %v1802
      %v1867 = vpack.c.b16 %v1803, %v1803
      %v1868 = vpack.c.b16 %v1804, %v1804
      %v1869 = vpack.c.b16 %v1805, %v1805
      %v1870 = vpack.c.b16 %v1806, %v1806
      %v1871 = vpack.c.b16 %v1807, %v1807
      %v1872 = vpack.c.b16 %v1808, %v1808
      %v1873 = vpack.c.b16 %v1809, %v1809
      %v1874 = vpack.c.b16 %v1810, %v1810
      %v1875 = vpack.c.b16 %v1811, %v1811
      %v1876 = vpack.c.b16 %v1812, %v1812
      %v1877 = vpack.c.b16 %v1813, %v1813
      %v1878 = vpack.c.b16 %v1814, %v1814
      %v1879 = vpack.c.b16 %v1815, %v1815
      %v1880 = vpack.c.b16 %v1816, %v1816
      %v1881 = vpack.c.b16 %v1817, %v1817
      %v1882 = vpack.c.b16 %v1818, %v1818
      %v1883 = vpack.c.b16 %v1819, %v1819
      %v1884 = vpack.c.b16 %v1820, %v1820
      %v1885 = vpack.c.b16 %v1821, %v1821
      %v1886 = vpack.c.b16 %v1822, %v1822
      %v1887 = vpack.c.b16 %v1823, %v1823
      %v1888 = vpack.c.b16 %v1824, %v1824
      %v1889 = vpack.c.b16 %v1825, %v1825
      %v1890 = vpack.c.b16 %v1826, %v1826
      %v1891 = vpack.c.b16 %v1827, %v1827
      %v1892 = vpack.c.b16 %v1828, %v1828
      %v1893 = vpack.c.b16 %v1829, %v1829
      %v1894 = vpack.c.b16 %v1830, %v1830
      %v1895 = vpack.c.b16 %v1831, %v1831
      %v1896 = vpack.c.b16 %v1832, %v1832
      %v1897 = vpack.c.b16 %v1833, %v1833
      %v1898 = vpack.c.b16 %v1834, %v1834
      %v1899 = vpack.c.b16 %v1835, %v1835
      %vm1964 = vcmask 519168
      %1965 = vst.msk [vmem:[%s4] sm:$0xf] %vm1964, %v1836
      %1966 = vst.msk [vmem:[%s4 + $0x4] sm:$0xf] %vm1964, %v1837
      %1967 = vst.msk [vmem:[%s4 + $0x8] sm:$0xf] %vm1964, %v1838
      %1968 = vst.msk [vmem:[%s4 + $0xc] sm:$0xf] %vm1964, %v1839
      %1969 = vst.msk [vmem:[%s4 + $0x10] sm:$0xf] %vm1964, %v1840
      %1970 = vst.msk [vmem:[%s4 + $0x14] sm:$0xf] %vm1964, %v1841
      %1971 = vst.msk [vmem:[%s4 + $0x18] sm:$0xf] %vm1964, %v1842
      %1972 = vst.msk [vmem:[%s4 + $0x1c] sm:$0xf] %vm1964, %v1843
      %1973 = vst.msk [vmem:[%s4 + $0x20] sm:$0xf] %vm1964, %v1844
      %1974 = vst.msk [vmem:[%s4 + $0x24] sm:$0xf] %vm1964, %v1845
      %1975 = vst.msk [vmem:[%s4 + $0x28] sm:$0xf] %vm1964, %v1846
      %1976 = vst.msk [vmem:[%s4 + $0x2c] sm:$0xf] %vm1964, %v1847
      %1977 = vst.msk [vmem:[%s4 + $0x30] sm:$0xf] %vm1964, %v1848
      %1978 = vst.msk [vmem:[%s4 + $0x34] sm:$0xf] %vm1964, %v1849
      %1979 = vst.msk [vmem:[%s4 + $0x38] sm:$0xf] %vm1964, %v1850
      %1980 = vst.msk [vmem:[%s4 + $0x3c] sm:$0xf] %vm1964, %v1851
      %1981 = vst.msk [vmem:[%s4 + $0x40] sm:$0xf] %vm1964, %v1852
      %1982 = vst.msk [vmem:[%s4 + $0x44] sm:$0xf] %vm1964, %v1853
      %1983 = vst.msk [vmem:[%s4 + $0x48] sm:$0xf] %vm1964, %v1854
      %1984 = vst.msk [vmem:[%s4 + $0x4c] sm:$0xf] %vm1964, %v1855
      %1985 = vst.msk [vmem:[%s4 + $0x50] sm:$0xf] %vm1964, %v1856
      %1986 = vst.msk [vmem:[%s4 + $0x54] sm:$0xf] %vm1964, %v1857
      %1987 = vst.msk [vmem:[%s4 + $0x58] sm:$0xf] %vm1964, %v1858
      %1988 = vst.msk [vmem:[%s4 + $0x5c] sm:$0xf] %vm1964, %v1859
      %1989 = vst.msk [vmem:[%s4 + $0x60] sm:$0xf] %vm1964, %v1860
      %1990 = vst.msk [vmem:[%s4 + $0x64] sm:$0xf] %vm1964, %v1861
      %1991 = vst.msk [vmem:[%s4 + $0x68] sm:$0xf] %vm1964, %v1862
      %1992 = vst.msk [vmem:[%s4 + $0x6c] sm:$0xf] %vm1964, %v1863
      %1993 = vst.msk [vmem:[%s4 + $0x70] sm:$0xf] %vm1964, %v1864
      %1994 = vst.msk [vmem:[%s4 + $0x74] sm:$0xf] %vm1964, %v1865
      %1995 = vst.msk [vmem:[%s4 + $0x78] sm:$0xf] %vm1964, %v1866
      %1996 = vst.msk [vmem:[%s4 + $0x7c] sm:$0xf] %vm1964, %v1867
      %1997 = vst.msk [vmem:[%s4 + $0x80] sm:$0xf] %vm1964, %v1868
      %1998 = vst.msk [vmem:[%s4 + $0x84] sm:$0xf] %vm1964, %v1869
      %1999 = vst.msk [vmem:[%s4 + $0x88] sm:$0xf] %vm1964, %v1870
      %2000 = vst.msk [vmem:[%s4 + $0x8c] sm:$0xf] %vm1964, %v1871
      %2001 = vst.msk [vmem:[%s4 + $0x90] sm:$0xf] %vm1964, %v1872
      %2002 = vst.msk [vmem:[%s4 + $0x94] sm:$0xf] %vm1964, %v1873
      %2003 = vst.msk [vmem:[%s4 + $0x98] sm:$0xf] %vm1964, %v1874
      %2004 = vst.msk [vmem:[%s4 + $0x9c] sm:$0xf] %vm1964, %v1875
      %2005 = vst.msk [vmem:[%s4 + $0xa0] sm:$0xf] %vm1964, %v1876
      %2006 = vst.msk [vmem:[%s4 + $0xa4] sm:$0xf] %vm1964, %v1877
      %2007 = vst.msk [vmem:[%s4 + $0xa8] sm:$0xf] %vm1964, %v1878
      %2008 = vst.msk [vmem:[%s4 + $0xac] sm:$0xf] %vm1964, %v1879
      %2009 = vst.msk [vmem:[%s4 + $0xb0] sm:$0xf] %vm1964, %v1880
      %2010 = vst.msk [vmem:[%s4 + $0xb4] sm:$0xf] %vm1964, %v1881
      %2011 = vst.msk [vmem:[%s4 + $0xb8] sm:$0xf] %vm1964, %v1882
      %2012 = vst.msk [vmem:[%s4 + $0xbc] sm:$0xf] %vm1964, %v1883
      %2013 = vst.msk [vmem:[%s4 + $0xc0] sm:$0xf] %vm1964, %v1884
      %2014 = vst.msk [vmem:[%s4 + $0xc4] sm:$0xf] %vm1964, %v1885
      %2015 = vst.msk [vmem:[%s4 + $0xc8] sm:$0xf] %vm1964, %v1886
      %2016 = vst.msk [vmem:[%s4 + $0xcc] sm:$0xf] %vm1964, %v1887
      %2017 = vst.msk [vmem:[%s4 + $0xd0] sm:$0xf] %vm1964, %v1888
      %2018 = vst.msk [vmem:[%s4 + $0xd4] sm:$0xf] %vm1964, %v1889
      %2019 = vst.msk [vmem:[%s4 + $0xd8] sm:$0xf] %vm1964, %v1890
      %2020 = vst.msk [vmem:[%s4 + $0xdc] sm:$0xf] %vm1964, %v1891
      %2021 = vst.msk [vmem:[%s4 + $0xe0] sm:$0xf] %vm1964, %v1892
      %2022 = vst.msk [vmem:[%s4 + $0xe4] sm:$0xf] %vm1964, %v1893
      %2023 = vst.msk [vmem:[%s4 + $0xe8] sm:$0xf] %vm1964, %v1894
      %2024 = vst.msk [vmem:[%s4 + $0xec] sm:$0xf] %vm1964, %v1895
      %2025 = vst.msk [vmem:[%s4 + $0xf0] sm:$0xf] %vm1964, %v1896
      %2026 = vst.msk [vmem:[%s4 + $0xf4] sm:$0xf] %vm1964, %v1897
      %2027 = vst.msk [vmem:[%s4 + $0xf8] sm:$0xf] %vm1964, %v1898
      %2028 = vst.msk [vmem:[%s4 + $0xfc] sm:$0xf] %vm1964, %v1899
    $region29: #{tpu_custom_call.1} parent=1 // pred_fallthru
      _
    // Predicated region
    $region30: #{tpu_custom_call.1} parent=1 // pred_check
      _
    $region31: #{tpu_custom_call.1} parent=1 // pred_check_branch
      %2030 = sbr.rel (0) target = $region33
    $region32: #{tpu_custom_call.1} parent=1 // pred_region
      _
    $region33: #{tpu_custom_call.1} parent=1 // pred_fallthru
      _
    // Predicated region
    $region34: #{tpu_custom_call.1} parent=1 // pred_check
      _
    $region35: #{tpu_custom_call.1} parent=1 // pred_check_branch
      %2032 = sbr.rel (0) target = $region37
    $region36: #{tpu_custom_call.1} parent=1 // pred_region
      _
    $region37: #{tpu_custom_call.1} parent=1 // pred_fallthru
      _
    %2033 = vsyncpa [#allocation4], 1

</llo_original>
